<compile_context>
chip_gen: v7x
topology: tpu7x:2x2x1
jax: 0.10.0
libtpu: 0.0.40
codegen_flags: <defaults>
</compile_context>

<pallas_src>
import functools

import jax
import jax.numpy as jnp
from jax.experimental import pallas as pl
from jax.experimental.pallas import tpu as pltpu

F32 = jnp.float32


# ----------------------------------------------------------------------------
# Fused GNN-stack kernel (all GNN layers + layer mean in one pallas_call)
# ----------------------------------------------------------------------------
def _fused_gnn_kernel(n_layers, feat_dim,
                      lap_ref, trust_ref, add_ref, feat0_ref,
                      w_cat_ref, b_cat_ref,
                      w_am_ref, b_am_ref, a_main_ref,
                      w_aa_ref, b_aa_ref, a_add_ref,
                      w_at_ref, b_at_ref, a_trust_ref,
                      final_ref,
                      feat_sc, acc_sc):
    """Grid step l computes GNN layer l; scratch carries features + running sum."""
    l = pl.program_id(0)

    @pl.when(l == 0)
    def _():
        f0 = feat0_ref[...]
        feat_sc[...] = f0          # current features
        acc_sc[...] = f0           # initial embedding contributes to the mean

    feat = feat_sc[...]
    inter = feat * feat                                   # element-wise interaction
    fi = jnp.concatenate([feat, inter], axis=1)           # (N, 2F)

    w_cat = w_cat_ref[0]                                  # (2F, F) == [w_lin; w_iat]
    b_cat = b_cat_ref[0]                                  # (1, F)  == b_lin + b_iat
    w_lin = w_cat[:feat_dim, :]
    # identity fold: (L+I)@feat @ w_lin  ->  L@feat@w_lin  +  feat@w_lin
    # the right term (+ both biases) is shared by all three branches:
    feat_lin = jnp.dot(feat, w_lin, preferred_element_type=F32) + b_cat

    def branch(L_mat, w_att, b_att, a_vec):
        # ONE graph matmul on the concatenated RHS, ONE wide linear.
        g = jnp.dot(L_mat, fi, preferred_element_type=F32)               # (N, 2F)
        x12 = jnp.dot(g, w_cat, preferred_element_type=F32) + feat_lin   # (N, F) == x1+x2
        att = jnp.tanh(jnp.dot(x12, w_att, preferred_element_type=F32) + b_att)
        # width-1 attention matmul -> VPU multiply + lane reduction (no MXU)
        score = jnp.sum(att * a_vec, axis=-1, keepdims=True)             # (N, 1)
        return x12, jnp.mean(score)

    main_12, w_main = branch(lap_ref[...], w_am_ref[0], b_am_ref[0], a_main_ref[0])
    trust_12, w_trust = branch(trust_ref[...], w_at_ref[0], b_at_ref[0], a_trust_ref[0])
    add_12, w_add = branch(add_ref[...], w_aa_ref[0], b_aa_ref[0], a_add_ref[0])

    # softmax over [w_main, w_add, w_trust] (matches torch Beta ordering)
    wmax = jnp.maximum(jnp.maximum(w_main, w_add), w_trust)
    em = jnp.exp(w_main - wmax)
    ea = jnp.exp(w_add - wmax)
    et = jnp.exp(w_trust - wmax)
    inv_s = 1.0 / (em + ea + et)

    new_feat = (em * inv_s) * main_12 + (ea * inv_s) * add_12 + (et * inv_s) * trust_12
    feat_sc[...] = new_feat
    acc_sc[...] = acc_sc[...] + new_feat

    @pl.when(l == n_layers - 1)
    def _():
        final_ref[...] = acc_sc[...] * (1.0 / float(n_layers + 1))


def fused_gnn_forward(lap, trust_lap, add_lap, feat0, layer_params):
    """Runs all GNN layers + the layer-mean in a single pallas_call."""
    n, f = feat0.shape
    n_layers = len(layer_params)

    # Stack per-layer weights with a leading layer axis (all widths equal).
    w_cat = jnp.stack([jnp.concatenate([p["w_lin"], p["w_iat"]], axis=0)
                       for p in layer_params])                    # (L, 2F, F)
    b_cat = jnp.stack([p["b_lin"] + p["b_iat"] for p in layer_params])   # (L, 1, F)
    w_am = jnp.stack([p["w_am"] for p in layer_params])           # (L, F, F)
    b_am = jnp.stack([p["b_am"] for p in layer_params])           # (L, 1, F)
    a_main = jnp.stack([p["a_main"].T for p in layer_params])     # (L, 1, F)
    w_aa = jnp.stack([p["w_aa"] for p in layer_params])
    b_aa = jnp.stack([p["b_aa"] for p in layer_params])
    a_add = jnp.stack([p["a_add"].T for p in layer_params])
    w_at = jnp.stack([p["w_at"] for p in layer_params])
    b_at = jnp.stack([p["b_at"] for p in layer_params])
    a_trust = jnp.stack([p["a_trust"].T for p in layer_params])

    # Constant index_map -> DMA'd into VMEM once, resident across the layer axis.
    resident_nn = pl.BlockSpec((n, n), lambda l: (0, 0))
    resident_nf = pl.BlockSpec((n, f), lambda l: (0, 0))

    def per_layer(*shape):
        nz = len(shape)
        return pl.BlockSpec((1,) + shape, lambda l, _nz=nz: (l,) + (0,) * _nz)

    kernel = functools.partial(_fused_gnn_kernel, n_layers, f)

    return pl.pallas_call(
        kernel,
        out_shape=jax.ShapeDtypeStruct((n, f), F32),
        grid_spec=pltpu.PrefetchScalarGridSpec(
            num_scalar_prefetch=0,
            grid=(n_layers,),
            in_specs=[resident_nn, resident_nn, resident_nn, resident_nf,
                      per_layer(2 * f, f), per_layer(1, f),
                      per_layer(f, f), per_layer(1, f), per_layer(1, f),
                      per_layer(f, f), per_layer(1, f), per_layer(1, f),
                      per_layer(f, f), per_layer(1, f), per_layer(1, f)],
            out_specs=resident_nf,
            scratch_shapes=[pltpu.VMEM((n, f), F32),    # carried features
                            pltpu.VMEM((n, f), F32)]),  # running layer sum
        compiler_params=pltpu.CompilerParams(
            dimension_semantics=("arbitrary",),          # layer axis carries state
            vmem_limit_bytes=64 * 1024 * 1024),          # fits v5e/v6e/v7x budgets
    )(lap, trust_lap, add_lap, feat0,
      w_cat, b_cat,
      w_am, b_am, a_main,
      w_aa, b_aa, a_add,
      w_at, b_at, a_trust)


# ----------------------------------------------------------------------------
# MLP head kernel: transForm1 (+ReLU) -> transForm2 -> transForm3
# ----------------------------------------------------------------------------
def mlp_head_kernel(x_ref, w1_ref, b1_ref, w2_ref, b2_ref, w3_ref, b3_ref, out_ref):
    h = jnp.dot(x_ref[...], w1_ref[...], preferred_element_type=F32) + b1_ref[...]
    h = jnp.maximum(h, 0.0)
    h = jnp.dot(h, w2_ref[...], preferred_element_type=F32) + b2_ref[...]
    # final (32 -> 1) projection as VPU multiply + lane reduction (no width-1 MXU matmul)
    out_ref[...] = jnp.sum(h * w3_ref[...], axis=-1, keepdims=True) + b3_ref[...]


def mlp_head(x, params):
    b = x.shape[0]
    b_pad = ((b + 7) // 8) * 8          # pad batch to the f32 sublane multiple
    if b_pad != b:
        x = jnp.pad(x, ((0, b_pad - b), (0, 0)))
    vmem = pl.BlockSpec(memory_space=pltpu.MemorySpace.VMEM)
    args = (x, params["w1"], params["b1"], params["w2"], params["b2"],
            params["w3"].T, params["b3"])                # w3 passed as a (1, 32) row
    out = pl.pallas_call(
        mlp_head_kernel,
        out_shape=jax.ShapeDtypeStruct((b_pad, 1), F32),
        in_specs=[vmem] * len(args),
        out_specs=vmem,
    )(*args)
    return out[:b]


# ----------------------------------------------------------------------------
# Parameter init (deterministic, mirrors nn.Linear / xavier_uniform shapes)
# ----------------------------------------------------------------------------
def init_linear(key, fin, fout):
    k1, k2 = jax.random.split(key)
    lim = 1.0 / (fin ** 0.5)
    # stored as (fin, fout) so kernels do x @ W + b  (== torch x @ W.T + b)
    w = jax.random.uniform(k1, (fin, fout), minval=-lim, maxval=lim, dtype=F32)
    b = jax.random.uniform(k2, (1, fout), minval=-lim, maxval=lim, dtype=F32)
    return w, b


def init_gnn_layer(key, fin, fout):
    ks = jax.random.split(key, 8)
    p = {}
    p["w_lin"], p["b_lin"] = init_linear(ks[0], fin, fout)
    p["w_iat"], p["b_iat"] = init_linear(ks[1], fin, fout)
    p["w_am"], p["b_am"] = init_linear(ks[2], fin, fout)
    p["w_aa"], p["b_aa"] = init_linear(ks[3], fin, fout)
    p["w_at"], p["b_at"] = init_linear(ks[4], fin, fout)
    lim = (6.0 / (fout + 1)) ** 0.5          # xavier_uniform for (fout, 1)
    p["a_main"] = jax.random.uniform(ks[5], (fout, 1), minval=-lim, maxval=lim, dtype=F32)
    p["a_add"] = jax.random.uniform(ks[6], (fout, 1), minval=-lim, maxval=lim, dtype=F32)
    p["a_trust"] = jax.random.uniform(ks[7], (fout, 1), minval=-lim, maxval=lim, dtype=F32)
    return p


def init_gcf(key, user_num, item_num, embed_size, layers):
    ks = jax.random.split(key, 6 + len(layers) - 1)
    params = {
        "uEmbd": jax.random.normal(ks[0], (user_num, embed_size), dtype=F32),
        "iEmbd": jax.random.normal(ks[1], (item_num, embed_size), dtype=F32),
    }
    params["w1"], params["b1"] = init_linear(ks[2], layers[-1] * 2, 64)
    params["w2"], params["b2"] = init_linear(ks[3], 64, 32)
    params["w3"], params["b3"] = init_linear(ks[4], 32, 1)
    params["gnn_layers"] = [
        init_gnn_layer(ks[5 + i], f_in, f_out)
        for i, (f_in, f_out) in enumerate(zip(layers[:-1], layers[1:]))
    ]
    return params


# ----------------------------------------------------------------------------
# Synthetic normalized Laplacians (dense replacement of the scipy sparse build)
# Kept f32 for numerical fidelity; bf16 storage (with f32 MXU accumulation) is a
# ~2x HBM-traffic win at large N if acceptable.
# ----------------------------------------------------------------------------
def normalize_adj(a):
    deg = (a > 0).sum(axis=1).astype(F32)
    deg = jnp.where(deg == 0, 1.0, deg)
    d = deg ** -0.5
    return d[:, None] * a * d[None, :]


def build_laplacians(key, user_num, item_num):
    n = user_num + item_num
    k1, k2, k3 = jax.random.split(key, 3)
    r = jax.random.bernoulli(k1, 0.3, (user_num, item_num)).astype(F32)
    r_add = jax.random.bernoulli(k2, 0.3, (user_num, item_num)).astype(F32)
    t = jax.random.bernoulli(k3, 0.3, (user_num, user_num)).astype(F32)

    a = jnp.zeros((n, n), F32)
    a = a.at[:user_num, user_num:].set(r)
    a = a.at[user_num:, :user_num].set(r.T)

    a_add = jnp.zeros((n, n), F32)
    a_add = a_add.at[:user_num, user_num:].set(r_add)
    a_add = a_add.at[user_num:, :user_num].set(r_add.T)

    trust = jnp.zeros((n, n), F32)
    trust = trust.at[:user_num, :user_num].set(t)

    return normalize_adj(a), normalize_adj(trust), normalize_adj(a_add)


# ----------------------------------------------------------------------------
# GCF forward
# ----------------------------------------------------------------------------
def gcf_forward(params, lap, trust_lap, add_lap, user_idx, item_idx, user_num):
    features = jnp.concatenate([params["uEmbd"], params["iEmbd"]], axis=0)  # (N, F)

    # All GNN layers + the layer mean in a single fused Pallas kernel.
    final = fused_gnn_forward(lap, trust_lap, add_lap, features, params["gnn_layers"])

    # TODO(synk): the user/item row gather could be fused into the head kernel via
    # PrefetchScalarGridSpec scalar-prefetched indices; kept in glue (tiny, index-driven).
    user_embd = jnp.take(final, user_idx, axis=0)
    item_embd = jnp.take(final, item_idx + user_num, axis=0)

    embd = jnp.concatenate([user_embd, item_embd], axis=1)   # (B, 2*F)
    pred = mlp_head(embd, params)                            # (B, 1), Pallas
    return pred.reshape(-1), user_embd, item_embd, final


# ----------------------------------------------------------------------------
if __name__ == "__main__":
    USER_NUM, ITEM_NUM = 8, 8
    EMBED = 32
    LAYERS = [32, 32, 32]          # uniform widths so per-layer stacking is valid
    BATCH = 4

    key = jax.random.PRNGKey(0)
    k_param, k_graph, k_idx = jax.random.split(key, 3)

    params = init_gcf(k_param, USER_NUM, ITEM_NUM, EMBED, LAYERS)
    lap, trust_lap, add_lap = build_laplacians(k_graph, USER_NUM, ITEM_NUM)

    ku, ki = jax.random.split(k_idx)
    user_idx = jax.random.randint(ku, (BATCH,), 0, USER_NUM)
    item_idx = jax.random.randint(ki, (BATCH,), 0, ITEM_NUM)

    prediction, user_embd, item_embd, final_embeddings = gcf_forward(
        params, lap, trust_lap, add_lap, user_idx, item_idx, USER_NUM)

    jax.block_until_ready(prediction)
    jax.block_until_ready(final_embeddings)

    assert prediction.shape == (BATCH,)
    assert user_embd.shape == (BATCH, LAYERS[-1])
    assert item_embd.shape == (BATCH, LAYERS[-1])
    assert final_embeddings.shape == (USER_NUM + ITEM_NUM, LAYERS[-1])
    print("KERNEL_OK")
</pallas_src>

<mosaic_0001>
module attributes {stable_mosaic.version = 11 : i64} {
  func.func @_fused_gnn_kernel(%arg0: i32, %arg1: memref<16x16xf32, #tpu.memory_space<vmem>>, %arg2: memref<16x16xf32, #tpu.memory_space<vmem>>, %arg3: memref<16x16xf32, #tpu.memory_space<vmem>>, %arg4: memref<16x32xf32, #tpu.memory_space<vmem>>, %arg5: memref<1x64x32xf32, #tpu.memory_space<vmem>>, %arg6: memref<1x1x32xf32, #tpu.memory_space<vmem>>, %arg7: memref<1x32x32xf32, #tpu.memory_space<vmem>>, %arg8: memref<1x1x32xf32, #tpu.memory_space<vmem>>, %arg9: memref<1x1x32xf32, #tpu.memory_space<vmem>>, %arg10: memref<1x32x32xf32, #tpu.memory_space<vmem>>, %arg11: memref<1x1x32xf32, #tpu.memory_space<vmem>>, %arg12: memref<1x1x32xf32, #tpu.memory_space<vmem>>, %arg13: memref<1x32x32xf32, #tpu.memory_space<vmem>>, %arg14: memref<1x1x32xf32, #tpu.memory_space<vmem>>, %arg15: memref<1x1x32xf32, #tpu.memory_space<vmem>>, %arg16: memref<16x32xf32, #tpu.memory_space<vmem>>, %arg17: memref<16x32xf32, #tpu.memory_space<vmem>>, %arg18: memref<16x32xf32, #tpu.memory_space<vmem>>) attributes {dimension_semantics = [#tpu.dimension_semantics<arbitrary>], iteration_bounds = array<i64: 2>, scalar_prefetch = 0 : i64, scratch_operands = 2 : i64, tpu.core_type = #tpu.core_type<tc>, window_params = [{pipeline_mode = #tpu.pipeline_mode<synchronous>, transform_indices = @transform_0, window_bounds = array<i64: 16, 16>}, {pipeline_mode = #tpu.pipeline_mode<synchronous>, transform_indices = @transform_1, window_bounds = array<i64: 16, 16>}, {pipeline_mode = #tpu.pipeline_mode<synchronous>, transform_indices = @transform_2, window_bounds = array<i64: 16, 16>}, {pipeline_mode = #tpu.pipeline_mode<synchronous>, transform_indices = @transform_3, window_bounds = array<i64: 16, 32>}, {transform_indices = @transform_4, window_bounds = array<i64: 1, 64, 32>}, {transform_indices = @transform_5, window_bounds = array<i64: 1, 1, 32>}, {transform_indices = @transform_6, window_bounds = array<i64: 1, 32, 32>}, {transform_indices = @transform_7, window_bounds = array<i64: 1, 1, 32>}, {transform_indices = @transform_8, window_bounds = array<i64: 1, 1, 32>}, {transform_indices = @transform_9, window_bounds = array<i64: 1, 32, 32>}, {transform_indices = @transform_10, window_bounds = array<i64: 1, 1, 32>}, {transform_indices = @transform_11, window_bounds = array<i64: 1, 1, 32>}, {transform_indices = @transform_12, window_bounds = array<i64: 1, 32, 32>}, {transform_indices = @transform_13, window_bounds = array<i64: 1, 1, 32>}, {transform_indices = @transform_14, window_bounds = array<i64: 1, 1, 32>}, {pipeline_mode = #tpu.pipeline_mode<synchronous>, transform_indices = @transform_15, window_bounds = array<i64: 16, 32>}]} {
    %c0_i32 = arith.constant 0 : i32
    %0 = arith.cmpi eq, %arg0, %c0_i32 : i32
    %1 = arith.extui %0 : i1 to i32
    %c0_i32_0 = arith.constant 0 : i32
    %2 = arith.cmpi ne, %1, %c0_i32_0 : i32
    scf.if %2 {
      %c0_67 = arith.constant 0 : index
      %c0_68 = arith.constant 0 : index
      %112 = vector.load %arg4[%c0_67, %c0_68] : memref<16x32xf32, #tpu.memory_space<vmem>>, vector<16x32xf32>
      %c0_69 = arith.constant 0 : index
      %c0_70 = arith.constant 0 : index
      %113 = vector.load %arg17[%c0_69, %c0_70] : memref<16x32xf32, #tpu.memory_space<vmem>>, vector<16x32xf32>
      tpu.vector_store %arg17[%c0_69, %c0_70], %112 {strides = array<i32>} : memref<16x32xf32, #tpu.memory_space<vmem>>, vector<16x32xf32>,
      %c0_71 = arith.constant 0 : index
      %c0_72 = arith.constant 0 : index
      %114 = vector.load %arg18[%c0_71, %c0_72] : memref<16x32xf32, #tpu.memory_space<vmem>>, vector<16x32xf32>
      tpu.vector_store %arg18[%c0_71, %c0_72], %112 {strides = array<i32>} : memref<16x32xf32, #tpu.memory_space<vmem>>, vector<16x32xf32>,
    } else {
    }
    %c0 = arith.constant 0 : index
    %c0_1 = arith.constant 0 : index
    %3 = vector.load %arg17[%c0, %c0_1] : memref<16x32xf32, #tpu.memory_space<vmem>>, vector<16x32xf32>
    %4 = arith.mulf %3, %3 : vector<16x32xf32>
    %5 = tpu.concatenate %3, %4 in 1 : vector<16x32xf32>, vector<16x32xf32> -> vector<16x64xf32>
    %c0_2 = arith.constant 0 : index
    %c0_3 = arith.constant 0 : index
    %c0_4 = arith.constant 0 : index
    %6 = vector.load %arg5[%c0_2, %c0_3, %c0_4] : memref<1x64x32xf32, #tpu.memory_space<vmem>>, vector<1x64x32xf32>
    %7 = vector.shape_cast %6 : vector<1x64x32xf32> to vector<64x32xf32>
    %c0_5 = arith.constant 0 : index
    %c0_6 = arith.constant 0 : index
    %c0_7 = arith.constant 0 : index
    %8 = vector.load %arg6[%c0_5, %c0_6, %c0_7] : memref<1x1x32xf32, #tpu.memory_space<vmem>>, vector<1x1x32xf32>
    %9 = vector.shape_cast %8 : vector<1x1x32xf32> to vector<1x32xf32>
    %10 = vector.extract_strided_slice %7 {offsets = [0, 0], sizes = [32, 32], strides = [1, 1]} : vector<64x32xf32> to vector<32x32xf32>
    %cst = arith.constant dense<0.000000e+00> : vector<16x32xf32>
    %11 = tpu.matmul %3, %10, %cst {dimension_numbers = #tpu.dot_dimension_numbers<[1], [0], [0], [1], [0, 0, 1, 1], [], []>} : vector<16x32xf32>, vector<32x32xf32>, vector<16x32xf32> -> vector<16x32xf32>
    %12 = vector.broadcast %9 : vector<1x32xf32> to vector<16x32xf32>
    %13 = arith.addf %11, %12 : vector<16x32xf32>
    %c0_8 = arith.constant 0 : index
    %c0_9 = arith.constant 0 : index
    %14 = vector.load %arg1[%c0_8, %c0_9] : memref<16x16xf32, #tpu.memory_space<vmem>>, vector<16x16xf32>
    %c0_10 = arith.constant 0 : index
    %c0_11 = arith.constant 0 : index
    %c0_12 = arith.constant 0 : index
    %15 = vector.load %arg7[%c0_10, %c0_11, %c0_12] : memref<1x32x32xf32, #tpu.memory_space<vmem>>, vector<1x32x32xf32>
    %16 = vector.shape_cast %15 : vector<1x32x32xf32> to vector<32x32xf32>
    %c0_13 = arith.constant 0 : index
    %c0_14 = arith.constant 0 : index
    %c0_15 = arith.constant 0 : index
    %17 = vector.load %arg8[%c0_13, %c0_14, %c0_15] : memref<1x1x32xf32, #tpu.memory_space<vmem>>, vector<1x1x32xf32>
    %18 = vector.shape_cast %17 : vector<1x1x32xf32> to vector<1x32xf32>
    %c0_16 = arith.constant 0 : index
    %c0_17 = arith.constant 0 : index
    %c0_18 = arith.constant 0 : index
    %19 = vector.load %arg9[%c0_16, %c0_17, %c0_18] : memref<1x1x32xf32, #tpu.memory_space<vmem>>, vector<1x1x32xf32>
    %20 = vector.shape_cast %19 : vector<1x1x32xf32> to vector<1x32xf32>
    %cst_19 = arith.constant dense<0.000000e+00> : vector<16x64xf32>
    %21 = tpu.matmul %14, %5, %cst_19 {dimension_numbers = #tpu.dot_dimension_numbers<[1], [0], [0], [1], [0, 0, 1, 1], [], []>} : vector<16x16xf32>, vector<16x64xf32>, vector<16x64xf32> -> vector<16x64xf32>
    %cst_20 = arith.constant dense<0.000000e+00> : vector<16x32xf32>
    %22 = tpu.matmul %21, %7, %cst_20 {dimension_numbers = #tpu.dot_dimension_numbers<[1], [0], [0], [1], [0, 0, 1, 1], [], []>} : vector<16x64xf32>, vector<64x32xf32>, vector<16x32xf32> -> vector<16x32xf32>
    %23 = arith.addf %22, %13 : vector<16x32xf32>
    %cst_21 = arith.constant dense<0.000000e+00> : vector<16x32xf32>
    %24 = tpu.matmul %23, %16, %cst_21 {dimension_numbers = #tpu.dot_dimension_numbers<[1], [0], [0], [1], [0, 0, 1, 1], [], []>} : vector<16x32xf32>, vector<32x32xf32>, vector<16x32xf32> -> vector<16x32xf32>
    %25 = vector.broadcast %18 : vector<1x32xf32> to vector<16x32xf32>
    %26 = arith.addf %24, %25 : vector<16x32xf32>
    %27 = math.tanh %26 : vector<16x32xf32>
    %28 = vector.broadcast %20 : vector<1x32xf32> to vector<16x32xf32>
    %29 = arith.mulf %27, %28 : vector<16x32xf32>
    %cst_22 = arith.constant dense<0.000000e+00> : vector<16xf32>
    %30 = vector.multi_reduction <add>, %29, %cst_22 [1] : vector<16x32xf32> to vector<16xf32>
    %31 = vector.shape_cast %30 : vector<16xf32> to vector<16x1xf32>
    %32 = vector.shape_cast %31 : vector<16x1xf32> to vector<1x16x1xf32>
    %cst_23 = arith.constant dense<0.000000e+00> : vector<1xf32>
    %33 = vector.multi_reduction <add>, %32, %cst_23 [1, 2] : vector<1x16x1xf32> to vector<1xf32>
    %34 = vector.shape_cast %33 : vector<1xf32> to vector<1x1x1xf32>
    %35 = vector.extract %34[0, 0, 0] : f32 from vector<1x1x1xf32>
    %cst_24 = arith.constant 1.600000e+01 : f32
    %36 = arith.divf %35, %cst_24 : f32
    %c0_25 = arith.constant 0 : index
    %c0_26 = arith.constant 0 : index
    %37 = vector.load %arg2[%c0_25, %c0_26] : memref<16x16xf32, #tpu.memory_space<vmem>>, vector<16x16xf32>
    %c0_27 = arith.constant 0 : index
    %c0_28 = arith.constant 0 : index
    %c0_29 = arith.constant 0 : index
    %38 = vector.load %arg13[%c0_27, %c0_28, %c0_29] : memref<1x32x32xf32, #tpu.memory_space<vmem>>, vector<1x32x32xf32>
    %39 = vector.shape_cast %38 : vector<1x32x32xf32> to vector<32x32xf32>
    %c0_30 = arith.constant 0 : index
    %c0_31 = arith.constant 0 : index
    %c0_32 = arith.constant 0 : index
    %40 = vector.load %arg14[%c0_30, %c0_31, %c0_32] : memref<1x1x32xf32, #tpu.memory_space<vmem>>, vector<1x1x32xf32>
    %41 = vector.shape_cast %40 : vector<1x1x32xf32> to vector<1x32xf32>
    %c0_33 = arith.constant 0 : index
    %c0_34 = arith.constant 0 : index
    %c0_35 = arith.constant 0 : index
    %42 = vector.load %arg15[%c0_33, %c0_34, %c0_35] : memref<1x1x32xf32, #tpu.memory_space<vmem>>, vector<1x1x32xf32>
    %43 = vector.shape_cast %42 : vector<1x1x32xf32> to vector<1x32xf32>
    %cst_36 = arith.constant dense<0.000000e+00> : vector<16x64xf32>
    %44 = tpu.matmul %37, %5, %cst_36 {dimension_numbers = #tpu.dot_dimension_numbers<[1], [0], [0], [1], [0, 0, 1, 1], [], []>} : vector<16x16xf32>, vector<16x64xf32>, vector<16x64xf32> -> vector<16x64xf32>
    %cst_37 = arith.constant dense<0.000000e+00> : vector<16x32xf32>
    %45 = tpu.matmul %44, %7, %cst_37 {dimension_numbers = #tpu.dot_dimension_numbers<[1], [0], [0], [1], [0, 0, 1, 1], [], []>} : vector<16x64xf32>, vector<64x32xf32>, vector<16x32xf32> -> vector<16x32xf32>
    %46 = arith.addf %45, %13 : vector<16x32xf32>
    %cst_38 = arith.constant dense<0.000000e+00> : vector<16x32xf32>
    %47 = tpu.matmul %46, %39, %cst_38 {dimension_numbers = #tpu.dot_dimension_numbers<[1], [0], [0], [1], [0, 0, 1, 1], [], []>} : vector<16x32xf32>, vector<32x32xf32>, vector<16x32xf32> -> vector<16x32xf32>
    %48 = vector.broadcast %41 : vector<1x32xf32> to vector<16x32xf32>
    %49 = arith.addf %47, %48 : vector<16x32xf32>
    %50 = math.tanh %49 : vector<16x32xf32>
    %51 = vector.broadcast %43 : vector<1x32xf32> to vector<16x32xf32>
    %52 = arith.mulf %50, %51 : vector<16x32xf32>
    %cst_39 = arith.constant dense<0.000000e+00> : vector<16xf32>
    %53 = vector.multi_reduction <add>, %52, %cst_39 [1] : vector<16x32xf32> to vector<16xf32>
    %54 = vector.shape_cast %53 : vector<16xf32> to vector<16x1xf32>
    %55 = vector.shape_cast %54 : vector<16x1xf32> to vector<1x16x1xf32>
    %cst_40 = arith.constant dense<0.000000e+00> : vector<1xf32>
    %56 = vector.multi_reduction <add>, %55, %cst_40 [1, 2] : vector<1x16x1xf32> to vector<1xf32>
    %57 = vector.shape_cast %56 : vector<1xf32> to vector<1x1x1xf32>
    %58 = vector.extract %57[0, 0, 0] : f32 from vector<1x1x1xf32>
    %cst_41 = arith.constant 1.600000e+01 : f32
    %59 = arith.divf %58, %cst_41 : f32
    %c0_42 = arith.constant 0 : index
    %c0_43 = arith.constant 0 : index
    %60 = vector.load %arg3[%c0_42, %c0_43] : memref<16x16xf32, #tpu.memory_space<vmem>>, vector<16x16xf32>
    %c0_44 = arith.constant 0 : index
    %c0_45 = arith.constant 0 : index
    %c0_46 = arith.constant 0 : index
    %61 = vector.load %arg10[%c0_44, %c0_45, %c0_46] : memref<1x32x32xf32, #tpu.memory_space<vmem>>, vector<1x32x32xf32>
    %62 = vector.shape_cast %61 : vector<1x32x32xf32> to vector<32x32xf32>
    %c0_47 = arith.constant 0 : index
    %c0_48 = arith.constant 0 : index
    %c0_49 = arith.constant 0 : index
    %63 = vector.load %arg11[%c0_47, %c0_48, %c0_49] : memref<1x1x32xf32, #tpu.memory_space<vmem>>, vector<1x1x32xf32>
    %64 = vector.shape_cast %63 : vector<1x1x32xf32> to vector<1x32xf32>
    %c0_50 = arith.constant 0 : index
    %c0_51 = arith.constant 0 : index
    %c0_52 = arith.constant 0 : index
    %65 = vector.load %arg12[%c0_50, %c0_51, %c0_52] : memref<1x1x32xf32, #tpu.memory_space<vmem>>, vector<1x1x32xf32>
    %66 = vector.shape_cast %65 : vector<1x1x32xf32> to vector<1x32xf32>
    %cst_53 = arith.constant dense<0.000000e+00> : vector<16x64xf32>
    %67 = tpu.matmul %60, %5, %cst_53 {dimension_numbers = #tpu.dot_dimension_numbers<[1], [0], [0], [1], [0, 0, 1, 1], [], []>} : vector<16x16xf32>, vector<16x64xf32>, vector<16x64xf32> -> vector<16x64xf32>
    %cst_54 = arith.constant dense<0.000000e+00> : vector<16x32xf32>
    %68 = tpu.matmul %67, %7, %cst_54 {dimension_numbers = #tpu.dot_dimension_numbers<[1], [0], [0], [1], [0, 0, 1, 1], [], []>} : vector<16x64xf32>, vector<64x32xf32>, vector<16x32xf32> -> vector<16x32xf32>
    %69 = arith.addf %68, %13 : vector<16x32xf32>
    %cst_55 = arith.constant dense<0.000000e+00> : vector<16x32xf32>
    %70 = tpu.matmul %69, %62, %cst_55 {dimension_numbers = #tpu.dot_dimension_numbers<[1], [0], [0], [1], [0, 0, 1, 1], [], []>} : vector<16x32xf32>, vector<32x32xf32>, vector<16x32xf32> -> vector<16x32xf32>
    %71 = vector.broadcast %64 : vector<1x32xf32> to vector<16x32xf32>
    %72 = arith.addf %70, %71 : vector<16x32xf32>
    %73 = math.tanh %72 : vector<16x32xf32>
    %74 = vector.broadcast %66 : vector<1x32xf32> to vector<16x32xf32>
    %75 = arith.mulf %73, %74 : vector<16x32xf32>
    %cst_56 = arith.constant dense<0.000000e+00> : vector<16xf32>
    %76 = vector.multi_reduction <add>, %75, %cst_56 [1] : vector<16x32xf32> to vector<16xf32>
    %77 = vector.shape_cast %76 : vector<16xf32> to vector<16x1xf32>
    %78 = vector.shape_cast %77 : vector<16x1xf32> to vector<1x16x1xf32>
    %cst_57 = arith.constant dense<0.000000e+00> : vector<1xf32>
    %79 = vector.multi_reduction <add>, %78, %cst_57 [1, 2] : vector<1x16x1xf32> to vector<1xf32>
    %80 = vector.shape_cast %79 : vector<1xf32> to vector<1x1x1xf32>
    %81 = vector.extract %80[0, 0, 0] : f32 from vector<1x1x1xf32>
    %cst_58 = arith.constant 1.600000e+01 : f32
    %82 = arith.divf %81, %cst_58 : f32
    %83 = arith.maximumf %36, %82 : f32
    %84 = arith.maximumf %83, %59 : f32
    %85 = arith.subf %36, %84 : f32
    %86 = math.exp %85 : f32
    %87 = arith.subf %82, %84 : f32
    %88 = math.exp %87 : f32
    %89 = arith.subf %59, %84 : f32
    %90 = math.exp %89 : f32
    %91 = arith.addf %86, %88 : f32
    %92 = arith.addf %91, %90 : f32
    %cst_59 = arith.constant 1.000000e+00 : f32
    %93 = arith.divf %cst_59, %92 : f32
    %94 = arith.mulf %86, %93 : f32
    %95 = vector.broadcast %94 : f32 to vector<16x32xf32>
    %96 = arith.mulf %95, %23 : vector<16x32xf32>
    %97 = arith.mulf %88, %93 : f32
    %98 = vector.broadcast %97 : f32 to vector<16x32xf32>
    %99 = arith.mulf %98, %69 : vector<16x32xf32>
    %100 = arith.addf %96, %99 : vector<16x32xf32>
    %101 = arith.mulf %90, %93 : f32
    %102 = vector.broadcast %101 : f32 to vector<16x32xf32>
    %103 = arith.mulf %102, %46 : vector<16x32xf32>
    %104 = arith.addf %100, %103 : vector<16x32xf32>
    %c0_60 = arith.constant 0 : index
    %c0_61 = arith.constant 0 : index
    %105 = vector.load %arg17[%c0_60, %c0_61] : memref<16x32xf32, #tpu.memory_space<vmem>>, vector<16x32xf32>
    tpu.vector_store %arg17[%c0_60, %c0_61], %104 {strides = array<i32>} : memref<16x32xf32, #tpu.memory_space<vmem>>, vector<16x32xf32>,
    %c0_62 = arith.constant 0 : index
    %c0_63 = arith.constant 0 : index
    %106 = vector.load %arg18[%c0_62, %c0_63] : memref<16x32xf32, #tpu.memory_space<vmem>>, vector<16x32xf32>
    %107 = arith.addf %106, %104 : vector<16x32xf32>
    %c0_64 = arith.constant 0 : index
    %c0_65 = arith.constant 0 : index
    %108 = vector.load %arg18[%c0_64, %c0_65] : memref<16x32xf32, #tpu.memory_space<vmem>>, vector<16x32xf32>
    tpu.vector_store %arg18[%c0_64, %c0_65], %107 {strides = array<i32>} : memref<16x32xf32, #tpu.memory_space<vmem>>, vector<16x32xf32>,
    %c1_i32 = arith.constant 1 : i32
    %109 = arith.cmpi eq, %arg0, %c1_i32 : i32
    %110 = arith.extui %109 : i1 to i32
    %c0_i32_66 = arith.constant 0 : i32
    %111 = arith.cmpi ne, %110, %c0_i32_66 : i32
    scf.if %111 {
      %c0_67 = arith.constant 0 : index
      %c0_68 = arith.constant 0 : index
      %112 = vector.load %arg18[%c0_67, %c0_68] : memref<16x32xf32, #tpu.memory_space<vmem>>, vector<16x32xf32>
      %cst_69 = arith.constant 0.333333343 : f32
      %113 = vector.broadcast %cst_69 : f32 to vector<16x32xf32>
      %114 = arith.mulf %112, %113 : vector<16x32xf32>
      %c0_70 = arith.constant 0 : index
      %c0_71 = arith.constant 0 : index
      %115 = vector.load %arg16[%c0_70, %c0_71] : memref<16x32xf32, #tpu.memory_space<vmem>>, vector<16x32xf32>
      tpu.vector_store %arg16[%c0_70, %c0_71], %114 {strides = array<i32>} : memref<16x32xf32, #tpu.memory_space<vmem>>, vector<16x32xf32>,
    } else {
    }
    return
  }
  func.func @transform_0(%arg0: i32) -> (i32, i32) {
    %c0_i32 = arith.constant 0 : i32
    %c0_i32_0 = arith.constant 0 : i32
    %c0_i32_1 = arith.constant 0 : i32
    return %c0_i32, %c0_i32_0 : i32, i32
  }
  func.func @transform_1(%arg0: i32) -> (i32, i32) {
    %c0_i32 = arith.constant 0 : i32
    %c0_i32_0 = arith.constant 0 : i32
    %c0_i32_1 = arith.constant 0 : i32
    return %c0_i32, %c0_i32_0 : i32, i32
  }
  func.func @transform_2(%arg0: i32) -> (i32, i32) {
    %c0_i32 = arith.constant 0 : i32
    %c0_i32_0 = arith.constant 0 : i32
    %c0_i32_1 = arith.constant 0 : i32
    return %c0_i32, %c0_i32_0 : i32, i32
  }
  func.func @transform_3(%arg0: i32) -> (i32, i32) {
    %c0_i32 = arith.constant 0 : i32
    %c0_i32_0 = arith.constant 0 : i32
    %c0_i32_1 = arith.constant 0 : i32
    return %c0_i32, %c0_i32_0 : i32, i32
  }
  func.func @transform_4(%arg0: i32) -> (i32, i32, i32) {
    %c0_i32 = arith.constant 0 : i32
    %c0_i32_0 = arith.constant 0 : i32
    %c0_i32_1 = arith.constant 0 : i32
    return %arg0, %c0_i32, %c0_i32_0 : i32, i32, i32
  }
  func.func @transform_5(%arg0: i32) -> (i32, i32, i32) {
    %c0_i32 = arith.constant 0 : i32
    %c0_i32_0 = arith.constant 0 : i32
    %c0_i32_1 = arith.constant 0 : i32
    return %arg0, %c0_i32, %c0_i32_0 : i32, i32, i32
  }
  func.func @transform_6(%arg0: i32) -> (i32, i32, i32) {
    %c0_i32 = arith.constant 0 : i32
    %c0_i32_0 = arith.constant 0 : i32
    %c0_i32_1 = arith.constant 0 : i32
    return %arg0, %c0_i32, %c0_i32_0 : i32, i32, i32
  }
  func.func @transform_7(%arg0: i32) -> (i32, i32, i32) {
    %c0_i32 = arith.constant 0 : i32
    %c0_i32_0 = arith.constant 0 : i32
    %c0_i32_1 = arith.constant 0 : i32
    return %arg0, %c0_i32, %c0_i32_0 : i32, i32, i32
  }
  func.func @transform_8(%arg0: i32) -> (i32, i32, i32) {
    %c0_i32 = arith.constant 0 : i32
    %c0_i32_0 = arith.constant 0 : i32
    %c0_i32_1 = arith.constant 0 : i32
    return %arg0, %c0_i32, %c0_i32_0 : i32, i32, i32
  }
  func.func @transform_9(%arg0: i32) -> (i32, i32, i32) {
    %c0_i32 = arith.constant 0 : i32
    %c0_i32_0 = arith.constant 0 : i32
    %c0_i32_1 = arith.constant 0 : i32
    return %arg0, %c0_i32, %c0_i32_0 : i32, i32, i32
  }
  func.func @transform_10(%arg0: i32) -> (i32, i32, i32) {
    %c0_i32 = arith.constant 0 : i32
    %c0_i32_0 = arith.constant 0 : i32
    %c0_i32_1 = arith.constant 0 : i32
    return %arg0, %c0_i32, %c0_i32_0 : i32, i32, i32
  }
  func.func @transform_11(%arg0: i32) -> (i32, i32, i32) {
    %c0_i32 = arith.constant 0 : i32
    %c0_i32_0 = arith.constant 0 : i32
    %c0_i32_1 = arith.constant 0 : i32
    return %arg0, %c0_i32, %c0_i32_0 : i32, i32, i32
  }
  func.func @transform_12(%arg0: i32) -> (i32, i32, i32) {
    %c0_i32 = arith.constant 0 : i32
    %c0_i32_0 = arith.constant 0 : i32
    %c0_i32_1 = arith.constant 0 : i32
    return %arg0, %c0_i32, %c0_i32_0 : i32, i32, i32
  }
  func.func @transform_13(%arg0: i32) -> (i32, i32, i32) {
    %c0_i32 = arith.constant 0 : i32
    %c0_i32_0 = arith.constant 0 : i32
    %c0_i32_1 = arith.constant 0 : i32
    return %arg0, %c0_i32, %c0_i32_0 : i32, i32, i32
  }
  func.func @transform_14(%arg0: i32) -> (i32, i32, i32) {
    %c0_i32 = arith.constant 0 : i32
    %c0_i32_0 = arith.constant 0 : i32
    %c0_i32_1 = arith.constant 0 : i32
    return %arg0, %c0_i32, %c0_i32_0 : i32, i32, i32
  }
  func.func @transform_15(%arg0: i32) -> (i32, i32) {
    %c0_i32 = arith.constant 0 : i32
    %c0_i32_0 = arith.constant 0 : i32
    %c0_i32_1 = arith.constant 0 : i32
    return %c0_i32, %c0_i32_0 : i32, i32
  }
}

</mosaic_0001>

<llo_original>
// kernel: tpu_custom_call.1
$region0: #{tpu_custom_call.1}
  #allocation0 [shape = 'u32[]', space=smem, size = 0x4, offset = 0x4, fixed_abs, tag = 'smem constant byte address 0x4 - core index']
  #allocation1 [shape = 'u32[144,128]{1,0:T(1,128)}', space=vmem, size = 0x12000, scoped, tag = 'internal scratch']
  #allocation2 [shape = 'f32[16,32]{1,0:T(8,128)}', space=vmem, size = 0x2000, scoped, tag = 'scratch operand']
  #allocation3 [shape = 'f32[16,32]{1,0:T(8,128)}', space=vmem, size = 0x2000, scoped, tag = 'scratch operand']
  %s0 = inlined_call_operand.hbm [shape: f32[16,16], index: 0, kind: input, shape index: {}]
  %s1 = inlined_call_operand.hbm [shape: f32[16,16], index: 1, kind: input, shape index: {}]
  %s2 = inlined_call_operand.hbm [shape: f32[16,16], index: 2, kind: input, shape index: {}]
  %s3 = inlined_call_operand.hbm [shape: f32[16,32], index: 3, kind: input, shape index: {}]
  %s4 = inlined_call_operand.hbm [shape: f32[2,64,32], index: 4, kind: input, shape index: {}]
  %s5 = inlined_call_operand.hbm [shape: f32[2,1,32], index: 5, kind: input, shape index: {}]
  %s6 = inlined_call_operand.hbm [shape: f32[2,32,32], index: 6, kind: input, shape index: {}]
  %s7 = inlined_call_operand.hbm [shape: f32[2,1,32], index: 7, kind: input, shape index: {}]
  %s8 = inlined_call_operand.hbm [shape: f32[2,1,32], index: 8, kind: input, shape index: {}]
  %s9 = inlined_call_operand.hbm [shape: f32[2,32,32], index: 9, kind: input, shape index: {}]
  %s10 = inlined_call_operand.hbm [shape: f32[2,1,32], index: 10, kind: input, shape index: {}]
  %s11 = inlined_call_operand.hbm [shape: f32[2,1,32], index: 11, kind: input, shape index: {}]
  %s12 = inlined_call_operand.hbm [shape: f32[2,32,32], index: 12, kind: input, shape index: {}]
  %s13 = inlined_call_operand.hbm [shape: f32[2,1,32], index: 13, kind: input, shape index: {}]
  %s14 = inlined_call_operand.hbm [shape: f32[2,1,32], index: 14, kind: input, shape index: {}]
  %s15 = inlined_call_operand.hbm [shape: f32[16,32], index: 15, kind: output, shape index: {}]
  %s16 = sld [smem:[#allocation0]]
  $region161: #{tpu_custom_call.1} parent=0
    _
  %s18 = ssub.s32 1, %s16
  %s19 = scalar_select 0, %s18, %s16
  $region1: #{tpu_custom_call.1} parent=0
    #allocation4 [shape = 'u8[8192]{0}', space=vmem, size = 0x2000, scoped, tag = 'input window, operand 0, single buffered']
    #allocation5 [shape = 's32[2]{0}', space=sflag, size = 0x8, scoped, tag = 'scoped memory for tpu_custom_call.1']
    #allocation6 [shape = 's32[2]{0}', space=sflag, size = 0x8, scoped, tag = 'scoped memory for tpu_custom_call.1']
    #allocation7 [shape = 'u8[8192]{0}', space=vmem, size = 0x2000, scoped, tag = 'input window, operand 1, single buffered']
    #allocation8 [shape = 's32[1]{0}', space=sflag, size = 0x4, scoped, tag = 'scoped memory for tpu_custom_call.1']
    #allocation9 [shape = 'u8[8192]{0}', space=vmem, size = 0x2000, scoped, tag = 'input window, operand 2, single buffered']
    #allocation10 [shape = 'u8[8192]{0}', space=vmem, size = 0x2000, scoped, tag = 'input window, operand 3, single buffered']
    #allocation11 [shape = 's32[1]{0}', space=sflag, size = 0x4, scoped, tag = 'scoped memory for tpu_custom_call.1']
    #allocation12 [shape = 'u8[65536]{0}', space=vmem, size = 0x10000, scoped, tag = 'input window, operand 4']
    #allocation13 [shape = 'u8[1024]{0}', space=vmem, size = 0x400, scoped, tag = 'input window, operand 5']
    #allocation14 [shape = 'u8[32768]{0}', space=vmem, size = 0x8000, scoped, tag = 'input window, operand 6']
    #allocation15 [shape = 'u8[1024]{0}', space=vmem, size = 0x400, scoped, tag = 'input window, operand 7']
    #allocation16 [shape = 'u8[1024]{0}', space=vmem, size = 0x400, scoped, tag = 'input window, operand 8']
    #allocation17 [shape = 'u8[32768]{0}', space=vmem, size = 0x8000, scoped, tag = 'input window, operand 9']
    #allocation18 [shape = 'u8[1024]{0}', space=vmem, size = 0x400, scoped, tag = 'input window, operand 10']
    #allocation19 [shape = 'u8[1024]{0}', space=vmem, size = 0x400, scoped, tag = 'input window, operand 11']
    #allocation20 [shape = 'u8[32768]{0}', space=vmem, size = 0x8000, scoped, tag = 'input window, operand 12']
    #allocation21 [shape = 'u8[1024]{0}', space=vmem, size = 0x400, scoped, tag = 'input window, operand 13']
    #allocation22 [shape = 'u8[1024]{0}', space=vmem, size = 0x400, scoped, tag = 'input window, operand 14']
    #allocation23 [shape = 'u8[8192]{0}', space=vmem, size = 0x2000, scoped, tag = 'output window, operand 0, single buffered']
    %20 = vsyncpa [#allocation5], 0
    %21 = vsyncpa [#allocation8], 0
    %22 = vsyncpa [#allocation11], 0
    %23 = vsyncpa [#allocation6], 0
    loop: start=0, step=1, limit=4
    $region2: #{tpu_custom_call.1} parent=1 // loop_pre_header
      _
    $region3: #{tpu_custom_call.1} parent=1 // loop_header
      %s25 = sphi 0, %s29
      %p26 = scmp.ge.s32.totalorder %s25, 4
      %s33 = sphi 0, %s33
      %s35 = sphi 0, %s33
      %s36 = sphi 0, %s35
      %s50 = sphi 0, %s36
      %s54 = sphi 0, %s54
      %s56 = sphi 0, %s54
      %s57 = sphi 0, %s56
      %s71 = sphi 0, %s57
      %s75 = sphi 0, %s75
      %s77 = sphi 0, %s75
      %s78 = sphi 0, %s77
      %s92 = sphi 0, %s78
      %s96 = sphi 0, %s96
      %s98 = sphi 0, %s96
      %s99 = sphi 0, %s98
      %s113 = sphi 0, %s99
      %s119 = sphi 0, %s121
      %s122 = sphi 0, %s119
      %s123 = sphi 0, %s122
      %s139 = sphi 0, %s123
      %s145 = sphi 0, %s147
      %s148 = sphi 0, %s145
      %s149 = sphi 0, %s148
      %s165 = sphi 0, %s149
      %s171 = sphi 0, %s173
      %s174 = sphi 0, %s171
      %s175 = sphi 0, %s174
      %s191 = sphi 0, %s175
      %s197 = sphi 0, %s199
      %s200 = sphi 0, %s197
      %s201 = sphi 0, %s200
      %s217 = sphi 0, %s201
      %s223 = sphi 0, %s225
      %s226 = sphi 0, %s223
      %s227 = sphi 0, %s226
      %s243 = sphi 0, %s227
      %s249 = sphi 0, %s251
      %s252 = sphi 0, %s249
      %s253 = sphi 0, %s252
      %s269 = sphi 0, %s253
      %s275 = sphi 0, %s277
      %s278 = sphi 0, %s275
      %s279 = sphi 0, %s278
      %s295 = sphi 0, %s279
      %s301 = sphi 0, %s303
      %s304 = sphi 0, %s301
      %s305 = sphi 0, %s304
      %s321 = sphi 0, %s305
      %s327 = sphi 0, %s329
      %s330 = sphi 0, %s327
      %s331 = sphi 0, %s330
      %s347 = sphi 0, %s331
      %s353 = sphi 0, %s355
      %s356 = sphi 0, %s353
      %s357 = sphi 0, %s356
      %s373 = sphi 0, %s357
      %s379 = sphi 0, %s381
      %s382 = sphi 0, %s379
      %s383 = sphi 0, %s382
      %s399 = sphi 0, %s383
      %s403 = sphi 0, %s403
      %s405 = sphi 0, %s403
      %s406 = sphi 0, %s405
      %s420 = sphi 0, %s406
    $region4: #{tpu_custom_call.1} parent=1 // loop_header_branch
      %28 = sbr.rel (%p26) target = $region8
    $region5: #{tpu_custom_call.1} parent=1 // loop_body
      %s30 = ssub.s32 %s25, 1
      %s31 = ssub.s32 %s25, 2
      %s32 = sadd.s32 %s25, 1
      %s34 = sadd.s32 %s33, 1
      %p37 = scmp.eq.s32.totalorder %s25, 1
      %p38 = scmp.ne.s32.totalorder %s33, %s35
      %p39 = scmp.eq.s32.totalorder %s25, 0
      %p40 = por %p38, %p39
      %p41 = scmp.ne.s32.totalorder %s33, %s35
      %p42 = scmp.eq.s32.totalorder %s30, 1
      %p43 = por %p41, %p42
      %p44 = scmp.ne.s32.totalorder %s35, %s36
      %p45 = scmp.eq.s32.totalorder %s30, 0
      %p46 = por %p44, %p45
      %p47 = scmp.ne.s32.totalorder %s35, %s36
      %p48 = scmp.eq.s32.totalorder %s31, 1
      %p49 = por %p47, %p48
      %p51 = scmp.ne.s32.totalorder %s36, %s50
      %p52 = scmp.eq.s32.totalorder %s31, 0
      %p53 = por %p51, %p52
      %s55 = sadd.s32 %s54, 1
      %p58 = scmp.eq.s32.totalorder %s25, 1
      %p59 = scmp.ne.s32.totalorder %s54, %s56
      %p60 = scmp.eq.s32.totalorder %s25, 0
      %p61 = por %p59, %p60
      %p62 = scmp.ne.s32.totalorder %s54, %s56
      %p63 = scmp.eq.s32.totalorder %s30, 1
      %p64 = por %p62, %p63
      %p65 = scmp.ne.s32.totalorder %s56, %s57
      %p66 = scmp.eq.s32.totalorder %s30, 0
      %p67 = por %p65, %p66
      %p68 = scmp.ne.s32.totalorder %s56, %s57
      %p69 = scmp.eq.s32.totalorder %s31, 1
      %p70 = por %p68, %p69
      %p72 = scmp.ne.s32.totalorder %s57, %s71
      %p73 = scmp.eq.s32.totalorder %s31, 0
      %p74 = por %p72, %p73
      %s76 = sadd.s32 %s75, 1
      %p79 = scmp.eq.s32.totalorder %s25, 1
      %p80 = scmp.ne.s32.totalorder %s75, %s77
      %p81 = scmp.eq.s32.totalorder %s25, 0
      %p82 = por %p80, %p81
      %p83 = scmp.ne.s32.totalorder %s75, %s77
      %p84 = scmp.eq.s32.totalorder %s30, 1
      %p85 = por %p83, %p84
      %p86 = scmp.ne.s32.totalorder %s77, %s78
      %p87 = scmp.eq.s32.totalorder %s30, 0
      %p88 = por %p86, %p87
      %p89 = scmp.ne.s32.totalorder %s77, %s78
      %p90 = scmp.eq.s32.totalorder %s31, 1
      %p91 = por %p89, %p90
      %p93 = scmp.ne.s32.totalorder %s78, %s92
      %p94 = scmp.eq.s32.totalorder %s31, 0
      %p95 = por %p93, %p94
      %s97 = sadd.s32 %s96, 1
      %p100 = scmp.eq.s32.totalorder %s25, 1
      %p101 = scmp.ne.s32.totalorder %s96, %s98
      %p102 = scmp.eq.s32.totalorder %s25, 0
      %p103 = por %p101, %p102
      %p104 = scmp.ne.s32.totalorder %s96, %s98
      %p105 = scmp.eq.s32.totalorder %s30, 1
      %p106 = por %p104, %p105
      %p107 = scmp.ne.s32.totalorder %s98, %s99
      %p108 = scmp.eq.s32.totalorder %s30, 0
      %p109 = por %p107, %p108
      %p110 = scmp.ne.s32.totalorder %s98, %s99
      %p111 = scmp.eq.s32.totalorder %s31, 1
      %p112 = por %p110, %p111
      %p114 = scmp.ne.s32.totalorder %s99, %s113
      %p115 = scmp.eq.s32.totalorder %s31, 0
      %p116 = por %p114, %p115
      %s117 = ssub.s32 %s25, %s32
      %p118 = scmp.eq.s32.totalorder %s117, 0
      %s120 = sadd.s32 %s119, 1
      %s121 = scalar_select %p118, %s119, %s120
      %p124 = pneg %p118
      %p125 = scmp.eq.s32.totalorder %s25, 1
      %p126 = por %p124, %p125
      %p127 = scmp.ne.s32.totalorder %s119, %s122
      %p128 = scmp.eq.s32.totalorder %s25, 0
      %p129 = por %p127, %p128
      %p130 = scmp.ne.s32.totalorder %s119, %s122
      %p131 = scmp.eq.s32.totalorder %s30, 1
      %p132 = por %p130, %p131
      %p133 = scmp.ne.s32.totalorder %s122, %s123
      %p134 = scmp.eq.s32.totalorder %s30, 0
      %p135 = por %p133, %p134
      %p136 = scmp.ne.s32.totalorder %s122, %s123
      %p137 = scmp.eq.s32.totalorder %s31, 1
      %p138 = por %p136, %p137
      %p140 = scmp.ne.s32.totalorder %s123, %s139
      %p141 = scmp.eq.s32.totalorder %s31, 0
      %p142 = por %p140, %p141
      %s143 = ssub.s32 %s25, %s32
      %p144 = scmp.eq.s32.totalorder %s143, 0
      %s146 = sadd.s32 %s145, 1
      %s147 = scalar_select %p144, %s145, %s146
      %p150 = pneg %p144
      %p151 = scmp.eq.s32.totalorder %s25, 1
      %p152 = por %p150, %p151
      %p153 = scmp.ne.s32.totalorder %s145, %s148
      %p154 = scmp.eq.s32.totalorder %s25, 0
      %p155 = por %p153, %p154
      %p156 = scmp.ne.s32.totalorder %s145, %s148
      %p157 = scmp.eq.s32.totalorder %s30, 1
      %p158 = por %p156, %p157
      %p159 = scmp.ne.s32.totalorder %s148, %s149
      %p160 = scmp.eq.s32.totalorder %s30, 0
      %p161 = por %p159, %p160
      %p162 = scmp.ne.s32.totalorder %s148, %s149
      %p163 = scmp.eq.s32.totalorder %s31, 1
      %p164 = por %p162, %p163
      %p166 = scmp.ne.s32.totalorder %s149, %s165
      %p167 = scmp.eq.s32.totalorder %s31, 0
      %p168 = por %p166, %p167
      %s169 = ssub.s32 %s25, %s32
      %p170 = scmp.eq.s32.totalorder %s169, 0
      %s172 = sadd.s32 %s171, 1
      %s173 = scalar_select %p170, %s171, %s172
      %p176 = pneg %p170
      %p177 = scmp.eq.s32.totalorder %s25, 1
      %p178 = por %p176, %p177
      %p179 = scmp.ne.s32.totalorder %s171, %s174
      %p180 = scmp.eq.s32.totalorder %s25, 0
      %p181 = por %p179, %p180
      %p182 = scmp.ne.s32.totalorder %s171, %s174
      %p183 = scmp.eq.s32.totalorder %s30, 1
      %p184 = por %p182, %p183
      %p185 = scmp.ne.s32.totalorder %s174, %s175
      %p186 = scmp.eq.s32.totalorder %s30, 0
      %p187 = por %p185, %p186
      %p188 = scmp.ne.s32.totalorder %s174, %s175
      %p189 = scmp.eq.s32.totalorder %s31, 1
      %p190 = por %p188, %p189
      %p192 = scmp.ne.s32.totalorder %s175, %s191
      %p193 = scmp.eq.s32.totalorder %s31, 0
      %p194 = por %p192, %p193
      %s195 = ssub.s32 %s25, %s32
      %p196 = scmp.eq.s32.totalorder %s195, 0
      %s198 = sadd.s32 %s197, 1
      %s199 = scalar_select %p196, %s197, %s198
      %p202 = pneg %p196
      %p203 = scmp.eq.s32.totalorder %s25, 1
      %p204 = por %p202, %p203
      %p205 = scmp.ne.s32.totalorder %s197, %s200
      %p206 = scmp.eq.s32.totalorder %s25, 0
      %p207 = por %p205, %p206
      %p208 = scmp.ne.s32.totalorder %s197, %s200
      %p209 = scmp.eq.s32.totalorder %s30, 1
      %p210 = por %p208, %p209
      %p211 = scmp.ne.s32.totalorder %s200, %s201
      %p212 = scmp.eq.s32.totalorder %s30, 0
      %p213 = por %p211, %p212
      %p214 = scmp.ne.s32.totalorder %s200, %s201
      %p215 = scmp.eq.s32.totalorder %s31, 1
      %p216 = por %p214, %p215
      %p218 = scmp.ne.s32.totalorder %s201, %s217
      %p219 = scmp.eq.s32.totalorder %s31, 0
      %p220 = por %p218, %p219
      %s221 = ssub.s32 %s25, %s32
      %p222 = scmp.eq.s32.totalorder %s221, 0
      %s224 = sadd.s32 %s223, 1
      %s225 = scalar_select %p222, %s223, %s224
      %p228 = pneg %p222
      %p229 = scmp.eq.s32.totalorder %s25, 1
      %p230 = por %p228, %p229
      %p231 = scmp.ne.s32.totalorder %s223, %s226
      %p232 = scmp.eq.s32.totalorder %s25, 0
      %p233 = por %p231, %p232
      %p234 = scmp.ne.s32.totalorder %s223, %s226
      %p235 = scmp.eq.s32.totalorder %s30, 1
      %p236 = por %p234, %p235
      %p237 = scmp.ne.s32.totalorder %s226, %s227
      %p238 = scmp.eq.s32.totalorder %s30, 0
      %p239 = por %p237, %p238
      %p240 = scmp.ne.s32.totalorder %s226, %s227
      %p241 = scmp.eq.s32.totalorder %s31, 1
      %p242 = por %p240, %p241
      %p244 = scmp.ne.s32.totalorder %s227, %s243
      %p245 = scmp.eq.s32.totalorder %s31, 0
      %p246 = por %p244, %p245
      %s247 = ssub.s32 %s25, %s32
      %p248 = scmp.eq.s32.totalorder %s247, 0
      %s250 = sadd.s32 %s249, 1
      %s251 = scalar_select %p248, %s249, %s250
      %p254 = pneg %p248
      %p255 = scmp.eq.s32.totalorder %s25, 1
      %p256 = por %p254, %p255
      %p257 = scmp.ne.s32.totalorder %s249, %s252
      %p258 = scmp.eq.s32.totalorder %s25, 0
      %p259 = por %p257, %p258
      %p260 = scmp.ne.s32.totalorder %s249, %s252
      %p261 = scmp.eq.s32.totalorder %s30, 1
      %p262 = por %p260, %p261
      %p263 = scmp.ne.s32.totalorder %s252, %s253
      %p264 = scmp.eq.s32.totalorder %s30, 0
      %p265 = por %p263, %p264
      %p266 = scmp.ne.s32.totalorder %s252, %s253
      %p267 = scmp.eq.s32.totalorder %s31, 1
      %p268 = por %p266, %p267
      %p270 = scmp.ne.s32.totalorder %s253, %s269
      %p271 = scmp.eq.s32.totalorder %s31, 0
      %p272 = por %p270, %p271
      %s273 = ssub.s32 %s25, %s32
      %p274 = scmp.eq.s32.totalorder %s273, 0
      %s276 = sadd.s32 %s275, 1
      %s277 = scalar_select %p274, %s275, %s276
      %p280 = pneg %p274
      %p281 = scmp.eq.s32.totalorder %s25, 1
      %p282 = por %p280, %p281
      %p283 = scmp.ne.s32.totalorder %s275, %s278
      %p284 = scmp.eq.s32.totalorder %s25, 0
      %p285 = por %p283, %p284
      %p286 = scmp.ne.s32.totalorder %s275, %s278
      %p287 = scmp.eq.s32.totalorder %s30, 1
      %p288 = por %p286, %p287
      %p289 = scmp.ne.s32.totalorder %s278, %s279
      %p290 = scmp.eq.s32.totalorder %s30, 0
      %p291 = por %p289, %p290
      %p292 = scmp.ne.s32.totalorder %s278, %s279
      %p293 = scmp.eq.s32.totalorder %s31, 1
      %p294 = por %p292, %p293
      %p296 = scmp.ne.s32.totalorder %s279, %s295
      %p297 = scmp.eq.s32.totalorder %s31, 0
      %p298 = por %p296, %p297
      %s299 = ssub.s32 %s25, %s32
      %p300 = scmp.eq.s32.totalorder %s299, 0
      %s302 = sadd.s32 %s301, 1
      %s303 = scalar_select %p300, %s301, %s302
      %p306 = pneg %p300
      %p307 = scmp.eq.s32.totalorder %s25, 1
      %p308 = por %p306, %p307
      %p309 = scmp.ne.s32.totalorder %s301, %s304
      %p310 = scmp.eq.s32.totalorder %s25, 0
      %p311 = por %p309, %p310
      %p312 = scmp.ne.s32.totalorder %s301, %s304
      %p313 = scmp.eq.s32.totalorder %s30, 1
      %p314 = por %p312, %p313
      %p315 = scmp.ne.s32.totalorder %s304, %s305
      %p316 = scmp.eq.s32.totalorder %s30, 0
      %p317 = por %p315, %p316
      %p318 = scmp.ne.s32.totalorder %s304, %s305
      %p319 = scmp.eq.s32.totalorder %s31, 1
      %p320 = por %p318, %p319
      %p322 = scmp.ne.s32.totalorder %s305, %s321
      %p323 = scmp.eq.s32.totalorder %s31, 0
      %p324 = por %p322, %p323
      %s325 = ssub.s32 %s25, %s32
      %p326 = scmp.eq.s32.totalorder %s325, 0
      %s328 = sadd.s32 %s327, 1
      %s329 = scalar_select %p326, %s327, %s328
      %p332 = pneg %p326
      %p333 = scmp.eq.s32.totalorder %s25, 1
      %p334 = por %p332, %p333
      %p335 = scmp.ne.s32.totalorder %s327, %s330
      %p336 = scmp.eq.s32.totalorder %s25, 0
      %p337 = por %p335, %p336
      %p338 = scmp.ne.s32.totalorder %s327, %s330
      %p339 = scmp.eq.s32.totalorder %s30, 1
      %p340 = por %p338, %p339
      %p341 = scmp.ne.s32.totalorder %s330, %s331
      %p342 = scmp.eq.s32.totalorder %s30, 0
      %p343 = por %p341, %p342
      %p344 = scmp.ne.s32.totalorder %s330, %s331
      %p345 = scmp.eq.s32.totalorder %s31, 1
      %p346 = por %p344, %p345
      %p348 = scmp.ne.s32.totalorder %s331, %s347
      %p349 = scmp.eq.s32.totalorder %s31, 0
      %p350 = por %p348, %p349
      %s351 = ssub.s32 %s25, %s32
      %p352 = scmp.eq.s32.totalorder %s351, 0
      %s354 = sadd.s32 %s353, 1
      %s355 = scalar_select %p352, %s353, %s354
      %p358 = pneg %p352
      %p359 = scmp.eq.s32.totalorder %s25, 1
      %p360 = por %p358, %p359
      %p361 = scmp.ne.s32.totalorder %s353, %s356
      %p362 = scmp.eq.s32.totalorder %s25, 0
      %p363 = por %p361, %p362
      %p364 = scmp.ne.s32.totalorder %s353, %s356
      %p365 = scmp.eq.s32.totalorder %s30, 1
      %p366 = por %p364, %p365
      %p367 = scmp.ne.s32.totalorder %s356, %s357
      %p368 = scmp.eq.s32.totalorder %s30, 0
      %p369 = por %p367, %p368
      %p370 = scmp.ne.s32.totalorder %s356, %s357
      %p371 = scmp.eq.s32.totalorder %s31, 1
      %p372 = por %p370, %p371
      %p374 = scmp.ne.s32.totalorder %s357, %s373
      %p375 = scmp.eq.s32.totalorder %s31, 0
      %p376 = por %p374, %p375
      %s377 = ssub.s32 %s25, %s32
      %p378 = scmp.eq.s32.totalorder %s377, 0
      %s380 = sadd.s32 %s379, 1
      %s381 = scalar_select %p378, %s379, %s380
      %p384 = pneg %p378
      %p385 = scmp.eq.s32.totalorder %s25, 1
      %p386 = por %p384, %p385
      %p387 = scmp.ne.s32.totalorder %s379, %s382
      %p388 = scmp.eq.s32.totalorder %s25, 0
      %p389 = por %p387, %p388
      %p390 = scmp.ne.s32.totalorder %s379, %s382
      %p391 = scmp.eq.s32.totalorder %s30, 1
      %p392 = por %p390, %p391
      %p393 = scmp.ne.s32.totalorder %s382, %s383
      %p394 = scmp.eq.s32.totalorder %s30, 0
      %p395 = por %p393, %p394
      %p396 = scmp.ne.s32.totalorder %s382, %s383
      %p397 = scmp.eq.s32.totalorder %s31, 1
      %p398 = por %p396, %p397
      %p400 = scmp.ne.s32.totalorder %s383, %s399
      %p401 = scmp.eq.s32.totalorder %s31, 0
      %p402 = por %p400, %p401
      %s404 = sadd.s32 %s403, 1
      %p407 = scmp.eq.s32.totalorder %s25, 1
      %p408 = scmp.ne.s32.totalorder %s403, %s405
      %p409 = scmp.eq.s32.totalorder %s25, 0
      %p410 = por %p408, %p409
      %p411 = scmp.ne.s32.totalorder %s403, %s405
      %p412 = scmp.eq.s32.totalorder %s30, 1
      %p413 = por %p411, %p412
      %p414 = scmp.ne.s32.totalorder %s405, %s406
      %p415 = scmp.eq.s32.totalorder %s30, 0
      %p416 = por %p414, %p415
      %p417 = scmp.ne.s32.totalorder %s405, %s406
      %p418 = scmp.eq.s32.totalorder %s31, 1
      %p419 = por %p417, %p418
      %p421 = scmp.ne.s32.totalorder %s406, %s420
      %p422 = scmp.eq.s32.totalorder %s31, 0
      %p423 = por %p421, %p422
      %p424 = scmp.le.s32.totalorder 1, %s25
      %p425 = scmp.lt.s32.totalorder %s25, 3
      %p426 = pnand %p424, %p425
      %p427 = pneg %p426
      // Predicated region
      $region9: #{tpu_custom_call.1} parent=5 // pred_check
        _
      $region10: #{tpu_custom_call.1} parent=5 // pred_check_branch
        %429 = sbr.rel (%p426) target = $region12
      $region11: #{tpu_custom_call.1} parent=5 // pred_region
        %s430 = ssub.s32 %s25, 1
        // Predicated region
        $region13: #{tpu_custom_call.1} parent=11 // pred_check
          %p431 = pneg %p46
        $region14: #{tpu_custom_call.1} parent=11 // pred_check_branch
          %433 = sbr.rel (%p431) target = $region16
        $region15: #{tpu_custom_call.1} parent=11 // pred_region
          %s435 = ssub.s32 256, 256
          %436 = vsyncadd [#allocation5], %s435
          %s437 = sshll.u32 [#allocation4], 4
          %s438 = int_to_ptr.vmem [resolvable:$true] %s437
          %443 = dma.hbm_to_vmem [thread:$0]  %s0, 256, %s438, [#allocation5], 128, 128, 8
        $region16: #{tpu_custom_call.1} parent=11 // pred_fallthru
          _
        // Predicated region
        $region17: #{tpu_custom_call.1} parent=11 // pred_check
          %p444 = pneg %p67
        $region18: #{tpu_custom_call.1} parent=11 // pred_check_branch
          %446 = sbr.rel (%p444) target = $region20
        $region19: #{tpu_custom_call.1} parent=11 // pred_region
          %s448 = ssub.s32 256, 256
          %449 = vsyncadd [#allocation8], %s448
          %s450 = sshll.u32 [#allocation7], 4
          %s451 = int_to_ptr.vmem [resolvable:$true] %s450
          %456 = dma.hbm_to_vmem [thread:$0]  %s1, 256, %s451, [#allocation8], 128, 128, 8
        $region20: #{tpu_custom_call.1} parent=11 // pred_fallthru
          _
        // Predicated region
        $region21: #{tpu_custom_call.1} parent=11 // pred_check
          %p457 = pneg %p88
        $region22: #{tpu_custom_call.1} parent=11 // pred_check_branch
          %459 = sbr.rel (%p457) target = $region24
        $region23: #{tpu_custom_call.1} parent=11 // pred_region
          %s461 = ssub.s32 256, 256
          %462 = vsyncadd [#allocation8], %s461
          %s463 = sshll.u32 [#allocation9], 4
          %s464 = int_to_ptr.vmem [resolvable:$true] %s463
          %469 = dma.hbm_to_vmem [thread:$0]  %s2, 256, %s464, [#allocation8], 128, 128, 8
        $region24: #{tpu_custom_call.1} parent=11 // pred_fallthru
          _
        // Predicated region
        $region25: #{tpu_custom_call.1} parent=11 // pred_check
          %p470 = pneg %p109
        $region26: #{tpu_custom_call.1} parent=11 // pred_check_branch
          %472 = sbr.rel (%p470) target = $region28
        $region27: #{tpu_custom_call.1} parent=11 // pred_region
          %s474 = ssub.s32 256, 256
          %475 = vsyncadd [#allocation11], %s474
          %s476 = sshll.u32 [#allocation10], 4
          %s477 = int_to_ptr.vmem [resolvable:$true] %s476
          %482 = dma.hbm_to_vmem [thread:$0]  %s3, 256, %s477, [#allocation11], 128, 128, 8
        $region28: #{tpu_custom_call.1} parent=11 // pred_fallthru
          _
      $region12: #{tpu_custom_call.1} parent=5 // pred_fallthru
        _
      %p483 = scmp.lt.s32.totalorder %s25, 2
      // Predicated region
      $region29: #{tpu_custom_call.1} parent=5 // pred_check
        %p484 = pneg %p483
      $region30: #{tpu_custom_call.1} parent=5 // pred_check_branch
        %486 = sbr.rel (%p484) target = $region32
      $region31: #{tpu_custom_call.1} parent=5 // pred_region
        // Predicated region
        $region33: #{tpu_custom_call.1} parent=31 // pred_check
          %p487 = pneg %p129
        $region34: #{tpu_custom_call.1} parent=31 // pred_check_branch
          %489 = sbr.rel (%p487) target = $region36
        $region35: #{tpu_custom_call.1} parent=31 // pred_region
          %s490 = sand.u32 %s25, 1
          %s491 = scalar_lea.sflag [#allocation5], %s490
          %s492 = sand.u32 %s119, 1
          %s493 = smul.addr %s492, 64
          %s494 = scalar_lea.vmem [#allocation12], %s493
          %s496 = ssub.s32 1024, 1024
          %497 = vsyncadd %s491, %s496
          %s498 = smul.addr %s25, 8
          %s499 = smul.addr %s498, 128
          %s500 = scalar_lea.hbm %s4, %s499
          %s501 = sshll.u32 %s494, 4
          %s502 = int_to_ptr.vmem [resolvable:$true] %s501
          %507 = dma.hbm_to_vmem [thread:$0]  %s500, 1024, %s502, %s491, 128, 128, 8
        $region36: #{tpu_custom_call.1} parent=31 // pred_fallthru
          _
        // Predicated region
        $region37: #{tpu_custom_call.1} parent=31 // pred_check
          %p508 = pneg %p155
        $region38: #{tpu_custom_call.1} parent=31 // pred_check_branch
          %510 = sbr.rel (%p508) target = $region40
        $region39: #{tpu_custom_call.1} parent=31 // pred_region
          %s511 = sand.u32 %s25, 1
          %s512 = scalar_lea.sflag [#allocation5], %s511
          %s513 = sand.u32 %s145, 1
          %s514 = scalar_lea.vmem [#allocation13], %s513
          %s516 = ssub.s32 16, 16
          %517 = vsyncadd %s512, %s516
          %s518 = smul.addr %s25, 16
          %s519 = scalar_lea.hbm %s5, %s518
          %s521 = sshll.u32 %s514, 4
          %s522 = int_to_ptr.vmem [resolvable:$true] %s521
          %524 = dma.hbm_to_vmem [thread:$0]  %s519, 16, %s522, %s512
        $region40: #{tpu_custom_call.1} parent=31 // pred_fallthru
          _
        // Predicated region
        $region41: #{tpu_custom_call.1} parent=31 // pred_check
          %p525 = pneg %p181
        $region42: #{tpu_custom_call.1} parent=31 // pred_check_branch
          %527 = sbr.rel (%p525) target = $region44
        $region43: #{tpu_custom_call.1} parent=31 // pred_region
          %s528 = sand.u32 %s25, 1
          %s529 = scalar_lea.sflag [#allocation5], %s528
          %s530 = sand.u32 %s171, 1
          %s531 = smul.addr %s530, 32
          %s532 = scalar_lea.vmem [#allocation14], %s531
          %s534 = ssub.s32 512, 512
          %535 = vsyncadd %s529, %s534
          %s536 = smul.addr %s25, 4
          %s537 = smul.addr %s536, 128
          %s538 = scalar_lea.hbm %s6, %s537
          %s539 = sshll.u32 %s532, 4
          %s540 = int_to_ptr.vmem [resolvable:$true] %s539
          %545 = dma.hbm_to_vmem [thread:$0]  %s538, 512, %s540, %s529, 128, 128, 8
        $region44: #{tpu_custom_call.1} parent=31 // pred_fallthru
          _
        // Predicated region
        $region45: #{tpu_custom_call.1} parent=31 // pred_check
          %p546 = pneg %p207
        $region46: #{tpu_custom_call.1} parent=31 // pred_check_branch
          %548 = sbr.rel (%p546) target = $region48
        $region47: #{tpu_custom_call.1} parent=31 // pred_region
          %s549 = sand.u32 %s25, 1
          %s550 = scalar_lea.sflag [#allocation5], %s549
          %s551 = sand.u32 %s197, 1
          %s552 = scalar_lea.vmem [#allocation15], %s551
          %s554 = ssub.s32 16, 16
          %555 = vsyncadd %s550, %s554
          %s556 = smul.addr %s25, 16
          %s557 = scalar_lea.hbm %s7, %s556
          %s559 = sshll.u32 %s552, 4
          %s560 = int_to_ptr.vmem [resolvable:$true] %s559
          %562 = dma.hbm_to_vmem [thread:$0]  %s557, 16, %s560, %s550
        $region48: #{tpu_custom_call.1} parent=31 // pred_fallthru
          _
        // Predicated region
        $region49: #{tpu_custom_call.1} parent=31 // pred_check
          %p563 = pneg %p233
        $region50: #{tpu_custom_call.1} parent=31 // pred_check_branch
          %565 = sbr.rel (%p563) target = $region52
        $region51: #{tpu_custom_call.1} parent=31 // pred_region
          %s566 = sand.u32 %s25, 1
          %s567 = scalar_lea.sflag [#allocation5], %s566
          %s568 = sand.u32 %s223, 1
          %s569 = scalar_lea.vmem [#allocation16], %s568
          %s571 = ssub.s32 16, 16
          %572 = vsyncadd %s567, %s571
          %s573 = smul.addr %s25, 16
          %s574 = scalar_lea.hbm %s8, %s573
          %s576 = sshll.u32 %s569, 4
          %s577 = int_to_ptr.vmem [resolvable:$true] %s576
          %579 = dma.hbm_to_vmem [thread:$0]  %s574, 16, %s577, %s567
        $region52: #{tpu_custom_call.1} parent=31 // pred_fallthru
          _
        // Predicated region
        $region53: #{tpu_custom_call.1} parent=31 // pred_check
          %p580 = pneg %p259
        $region54: #{tpu_custom_call.1} parent=31 // pred_check_branch
          %582 = sbr.rel (%p580) target = $region56
        $region55: #{tpu_custom_call.1} parent=31 // pred_region
          %s583 = sand.u32 %s25, 1
          %s584 = scalar_lea.sflag [#allocation5], %s583
          %s585 = sand.u32 %s249, 1
          %s586 = smul.addr %s585, 32
          %s587 = scalar_lea.vmem [#allocation17], %s586
          %s589 = ssub.s32 512, 512
          %590 = vsyncadd %s584, %s589
          %s591 = smul.addr %s25, 4
          %s592 = smul.addr %s591, 128
          %s593 = scalar_lea.hbm %s9, %s592
          %s594 = sshll.u32 %s587, 4
          %s595 = int_to_ptr.vmem [resolvable:$true] %s594
          %600 = dma.hbm_to_vmem [thread:$0]  %s593, 512, %s595, %s584, 128, 128, 8
        $region56: #{tpu_custom_call.1} parent=31 // pred_fallthru
          _
        // Predicated region
        $region57: #{tpu_custom_call.1} parent=31 // pred_check
          %p601 = pneg %p285
        $region58: #{tpu_custom_call.1} parent=31 // pred_check_branch
          %603 = sbr.rel (%p601) target = $region60
        $region59: #{tpu_custom_call.1} parent=31 // pred_region
          %s604 = sand.u32 %s25, 1
          %s605 = scalar_lea.sflag [#allocation5], %s604
          %s606 = sand.u32 %s275, 1
          %s607 = scalar_lea.vmem [#allocation18], %s606
          %s609 = ssub.s32 16, 16
          %610 = vsyncadd %s605, %s609
          %s611 = smul.addr %s25, 16
          %s612 = scalar_lea.hbm %s10, %s611
          %s614 = sshll.u32 %s607, 4
          %s615 = int_to_ptr.vmem [resolvable:$true] %s614
          %617 = dma.hbm_to_vmem [thread:$0]  %s612, 16, %s615, %s605
        $region60: #{tpu_custom_call.1} parent=31 // pred_fallthru
          _
        // Predicated region
        $region61: #{tpu_custom_call.1} parent=31 // pred_check
          %p618 = pneg %p311
        $region62: #{tpu_custom_call.1} parent=31 // pred_check_branch
          %620 = sbr.rel (%p618) target = $region64
        $region63: #{tpu_custom_call.1} parent=31 // pred_region
          %s621 = sand.u32 %s25, 1
          %s622 = scalar_lea.sflag [#allocation5], %s621
          %s623 = sand.u32 %s301, 1
          %s624 = scalar_lea.vmem [#allocation19], %s623
          %s626 = ssub.s32 16, 16
          %627 = vsyncadd %s622, %s626
          %s628 = smul.addr %s25, 16
          %s629 = scalar_lea.hbm %s11, %s628
          %s631 = sshll.u32 %s624, 4
          %s632 = int_to_ptr.vmem [resolvable:$true] %s631
          %634 = dma.hbm_to_vmem [thread:$0]  %s629, 16, %s632, %s622
        $region64: #{tpu_custom_call.1} parent=31 // pred_fallthru
          _
        // Predicated region
        $region65: #{tpu_custom_call.1} parent=31 // pred_check
          %p635 = pneg %p337
        $region66: #{tpu_custom_call.1} parent=31 // pred_check_branch
          %637 = sbr.rel (%p635) target = $region68
        $region67: #{tpu_custom_call.1} parent=31 // pred_region
          %s638 = sand.u32 %s25, 1
          %s639 = scalar_lea.sflag [#allocation5], %s638
          %s640 = sand.u32 %s327, 1
          %s641 = smul.addr %s640, 32
          %s642 = scalar_lea.vmem [#allocation20], %s641
          %s644 = ssub.s32 512, 512
          %645 = vsyncadd %s639, %s644
          %s646 = smul.addr %s25, 4
          %s647 = smul.addr %s646, 128
          %s648 = scalar_lea.hbm %s12, %s647
          %s649 = sshll.u32 %s642, 4
          %s650 = int_to_ptr.vmem [resolvable:$true] %s649
          %655 = dma.hbm_to_vmem [thread:$0]  %s648, 512, %s650, %s639, 128, 128, 8
        $region68: #{tpu_custom_call.1} parent=31 // pred_fallthru
          _
        // Predicated region
        $region69: #{tpu_custom_call.1} parent=31 // pred_check
          %p656 = pneg %p363
        $region70: #{tpu_custom_call.1} parent=31 // pred_check_branch
          %658 = sbr.rel (%p656) target = $region72
        $region71: #{tpu_custom_call.1} parent=31 // pred_region
          %s659 = sand.u32 %s25, 1
          %s660 = scalar_lea.sflag [#allocation5], %s659
          %s661 = sand.u32 %s353, 1
          %s662 = scalar_lea.vmem [#allocation21], %s661
          %s664 = ssub.s32 16, 16
          %665 = vsyncadd %s660, %s664
          %s666 = smul.addr %s25, 16
          %s667 = scalar_lea.hbm %s13, %s666
          %s669 = sshll.u32 %s662, 4
          %s670 = int_to_ptr.vmem [resolvable:$true] %s669
          %672 = dma.hbm_to_vmem [thread:$0]  %s667, 16, %s670, %s660
        $region72: #{tpu_custom_call.1} parent=31 // pred_fallthru
          _
        // Predicated region
        $region73: #{tpu_custom_call.1} parent=31 // pred_check
          %p673 = pneg %p389
        $region74: #{tpu_custom_call.1} parent=31 // pred_check_branch
          %675 = sbr.rel (%p673) target = $region76
        $region75: #{tpu_custom_call.1} parent=31 // pred_region
          %s676 = sand.u32 %s25, 1
          %s677 = scalar_lea.sflag [#allocation5], %s676
          %s678 = sand.u32 %s379, 1
          %s679 = scalar_lea.vmem [#allocation22], %s678
          %s681 = ssub.s32 16, 16
          %682 = vsyncadd %s677, %s681
          %s683 = smul.addr %s25, 16
          %s684 = scalar_lea.hbm %s14, %s683
          %s686 = sshll.u32 %s679, 4
          %s687 = int_to_ptr.vmem [resolvable:$true] %s686
          %689 = dma.hbm_to_vmem [thread:$0]  %s684, 16, %s687, %s677
        $region76: #{tpu_custom_call.1} parent=31 // pred_fallthru
          _
      $region32: #{tpu_custom_call.1} parent=5 // pred_fallthru
        _
      %p690 = scmp.le.s32.totalorder 1, %s25
      %p691 = scmp.lt.s32.totalorder %s25, 3
      %p692 = pnand %p690, %p691
      %p693 = pneg %p692
      // Predicated region
      $region77: #{tpu_custom_call.1} parent=5 // pred_check
        _
      $region78: #{tpu_custom_call.1} parent=5 // pred_check_branch
        %695 = sbr.rel (%p692) target = $region80
      $region79: #{tpu_custom_call.1} parent=5 // pred_region
        %s696 = ssub.s32 %s25, 1
        // Predicated region
        $region81: #{tpu_custom_call.1} parent=79 // pred_check
          %p697 = pneg %p46
        $region82: #{tpu_custom_call.1} parent=79 // pred_check_branch
          %699 = sbr.rel (%p697) target = $region84
        $region83: #{tpu_custom_call.1} parent=79 // pred_region
          %700 = dma.done [#allocation5], 256
        $region84: #{tpu_custom_call.1} parent=79 // pred_fallthru
          _
        // Predicated region
        $region85: #{tpu_custom_call.1} parent=79 // pred_check
          %p701 = pneg %p67
        $region86: #{tpu_custom_call.1} parent=79 // pred_check_branch
          %703 = sbr.rel (%p701) target = $region88
        $region87: #{tpu_custom_call.1} parent=79 // pred_region
          %704 = dma.done [#allocation8], 256
        $region88: #{tpu_custom_call.1} parent=79 // pred_fallthru
          _
        // Predicated region
        $region89: #{tpu_custom_call.1} parent=79 // pred_check
          %p705 = pneg %p88
        $region90: #{tpu_custom_call.1} parent=79 // pred_check_branch
          %707 = sbr.rel (%p705) target = $region92
        $region91: #{tpu_custom_call.1} parent=79 // pred_region
          %708 = dma.done [#allocation8], 256
        $region92: #{tpu_custom_call.1} parent=79 // pred_fallthru
          _
        // Predicated region
        $region93: #{tpu_custom_call.1} parent=79 // pred_check
          %p709 = pneg %p109
        $region94: #{tpu_custom_call.1} parent=79 // pred_check_branch
          %711 = sbr.rel (%p709) target = $region96
        $region95: #{tpu_custom_call.1} parent=79 // pred_region
          %712 = dma.done [#allocation11], 256
        $region96: #{tpu_custom_call.1} parent=79 // pred_fallthru
          _
        %s713 = sand.u32 %s30, 1
        %s714 = scalar_lea.sflag [#allocation5], %s713
        %s715 = sand.u32 %s122, 1
        %s716 = smul.addr %s715, 64
        %s717 = scalar_lea.vmem [#allocation12], %s716
        // Predicated region
        $region97: #{tpu_custom_call.1} parent=79 // pred_check
          %p718 = pneg %p135
        $region98: #{tpu_custom_call.1} parent=79 // pred_check_branch
          %720 = sbr.rel (%p718) target = $region100
        $region99: #{tpu_custom_call.1} parent=79 // pred_region
          %721 = dma.done %s714, 1024
        $region100: #{tpu_custom_call.1} parent=79 // pred_fallthru
          _
        %s722 = sand.u32 %s30, 1
        %s723 = scalar_lea.sflag [#allocation5], %s722
        %s724 = sand.u32 %s148, 1
        %s725 = scalar_lea.vmem [#allocation13], %s724
        // Predicated region
        $region101: #{tpu_custom_call.1} parent=79 // pred_check
          %p726 = pneg %p161
        $region102: #{tpu_custom_call.1} parent=79 // pred_check_branch
          %728 = sbr.rel (%p726) target = $region104
        $region103: #{tpu_custom_call.1} parent=79 // pred_region
          %729 = dma.done %s723, 16
        $region104: #{tpu_custom_call.1} parent=79 // pred_fallthru
          _
        %s730 = sand.u32 %s30, 1
        %s731 = scalar_lea.sflag [#allocation5], %s730
        %s732 = sand.u32 %s174, 1
        %s733 = smul.addr %s732, 32
        %s734 = scalar_lea.vmem [#allocation14], %s733
        // Predicated region
        $region105: #{tpu_custom_call.1} parent=79 // pred_check
          %p735 = pneg %p187
        $region106: #{tpu_custom_call.1} parent=79 // pred_check_branch
          %737 = sbr.rel (%p735) target = $region108
        $region107: #{tpu_custom_call.1} parent=79 // pred_region
          %738 = dma.done %s731, 512
        $region108: #{tpu_custom_call.1} parent=79 // pred_fallthru
          _
        %s739 = sand.u32 %s30, 1
        %s740 = scalar_lea.sflag [#allocation5], %s739
        %s741 = sand.u32 %s200, 1
        %s742 = scalar_lea.vmem [#allocation15], %s741
        // Predicated region
        $region109: #{tpu_custom_call.1} parent=79 // pred_check
          %p743 = pneg %p213
        $region110: #{tpu_custom_call.1} parent=79 // pred_check_branch
          %745 = sbr.rel (%p743) target = $region112
        $region111: #{tpu_custom_call.1} parent=79 // pred_region
          %746 = dma.done %s740, 16
        $region112: #{tpu_custom_call.1} parent=79 // pred_fallthru
          _
        %s747 = sand.u32 %s30, 1
        %s748 = scalar_lea.sflag [#allocation5], %s747
        %s749 = sand.u32 %s226, 1
        %s750 = scalar_lea.vmem [#allocation16], %s749
        // Predicated region
        $region113: #{tpu_custom_call.1} parent=79 // pred_check
          %p751 = pneg %p239
        $region114: #{tpu_custom_call.1} parent=79 // pred_check_branch
          %753 = sbr.rel (%p751) target = $region116
        $region115: #{tpu_custom_call.1} parent=79 // pred_region
          %754 = dma.done %s748, 16
        $region116: #{tpu_custom_call.1} parent=79 // pred_fallthru
          _
        %s755 = sand.u32 %s30, 1
        %s756 = scalar_lea.sflag [#allocation5], %s755
        %s757 = sand.u32 %s252, 1
        %s758 = smul.addr %s757, 32
        %s759 = scalar_lea.vmem [#allocation17], %s758
        // Predicated region
        $region117: #{tpu_custom_call.1} parent=79 // pred_check
          %p760 = pneg %p265
        $region118: #{tpu_custom_call.1} parent=79 // pred_check_branch
          %762 = sbr.rel (%p760) target = $region120
        $region119: #{tpu_custom_call.1} parent=79 // pred_region
          %763 = dma.done %s756, 512
        $region120: #{tpu_custom_call.1} parent=79 // pred_fallthru
          _
        %s764 = sand.u32 %s30, 1
        %s765 = scalar_lea.sflag [#allocation5], %s764
        %s766 = sand.u32 %s278, 1
        %s767 = scalar_lea.vmem [#allocation18], %s766
        // Predicated region
        $region121: #{tpu_custom_call.1} parent=79 // pred_check
          %p768 = pneg %p291
        $region122: #{tpu_custom_call.1} parent=79 // pred_check_branch
          %770 = sbr.rel (%p768) target = $region124
        $region123: #{tpu_custom_call.1} parent=79 // pred_region
          %771 = dma.done %s765, 16
        $region124: #{tpu_custom_call.1} parent=79 // pred_fallthru
          _
        %s772 = sand.u32 %s30, 1
        %s773 = scalar_lea.sflag [#allocation5], %s772
        %s774 = sand.u32 %s304, 1
        %s775 = scalar_lea.vmem [#allocation19], %s774
        // Predicated region
        $region125: #{tpu_custom_call.1} parent=79 // pred_check
          %p776 = pneg %p317
        $region126: #{tpu_custom_call.1} parent=79 // pred_check_branch
          %778 = sbr.rel (%p776) target = $region128
        $region127: #{tpu_custom_call.1} parent=79 // pred_region
          %779 = dma.done %s773, 16
        $region128: #{tpu_custom_call.1} parent=79 // pred_fallthru
          _
        %s780 = sand.u32 %s30, 1
        %s781 = scalar_lea.sflag [#allocation5], %s780
        %s782 = sand.u32 %s330, 1
        %s783 = smul.addr %s782, 32
        %s784 = scalar_lea.vmem [#allocation20], %s783
        // Predicated region
        $region129: #{tpu_custom_call.1} parent=79 // pred_check
          %p785 = pneg %p343
        $region130: #{tpu_custom_call.1} parent=79 // pred_check_branch
          %787 = sbr.rel (%p785) target = $region132
        $region131: #{tpu_custom_call.1} parent=79 // pred_region
          %788 = dma.done %s781, 512
        $region132: #{tpu_custom_call.1} parent=79 // pred_fallthru
          _
        %s789 = sand.u32 %s30, 1
        %s790 = scalar_lea.sflag [#allocation5], %s789
        %s791 = sand.u32 %s356, 1
        %s792 = scalar_lea.vmem [#allocation21], %s791
        // Predicated region
        $region133: #{tpu_custom_call.1} parent=79 // pred_check
          %p793 = pneg %p369
        $region134: #{tpu_custom_call.1} parent=79 // pred_check_branch
          %795 = sbr.rel (%p793) target = $region136
        $region135: #{tpu_custom_call.1} parent=79 // pred_region
          %796 = dma.done %s790, 16
        $region136: #{tpu_custom_call.1} parent=79 // pred_fallthru
          _
        %s797 = sand.u32 %s30, 1
        %s798 = scalar_lea.sflag [#allocation5], %s797
        %s799 = sand.u32 %s382, 1
        %s800 = scalar_lea.vmem [#allocation22], %s799
        // Predicated region
        $region137: #{tpu_custom_call.1} parent=79 // pred_check
          %p801 = pneg %p395
        $region138: #{tpu_custom_call.1} parent=79 // pred_check_branch
          %803 = sbr.rel (%p801) target = $region140
        $region139: #{tpu_custom_call.1} parent=79 // pred_region
          %804 = dma.done %s798, 16
        $region140: #{tpu_custom_call.1} parent=79 // pred_fallthru
          _
        %p805 = pneg %p46
        %p806 = pneg %p43
        %p807 = pneg %p67
        %p808 = pneg %p64
        %p809 = pneg %p88
        %p810 = pneg %p85
        %p811 = pneg %p109
        %p812 = pneg %p106
        %s813 = sand.u32 %s30, 1
        %s814 = scalar_lea.sflag [#allocation5], %s813
        %s815 = sand.u32 %s122, 1
        %s816 = smul.addr %s815, 64
        %s817 = scalar_lea.vmem [#allocation12], %s816
        %p818 = pneg %p135
        %p819 = pneg %p132
        %s820 = sand.u32 %s30, 1
        %s821 = scalar_lea.sflag [#allocation5], %s820
        %s822 = sand.u32 %s148, 1
        %s823 = scalar_lea.vmem [#allocation13], %s822
        %p824 = pneg %p161
        %p825 = pneg %p158
        %s826 = sand.u32 %s30, 1
        %s827 = scalar_lea.sflag [#allocation5], %s826
        %s828 = sand.u32 %s174, 1
        %s829 = smul.addr %s828, 32
        %s830 = scalar_lea.vmem [#allocation14], %s829
        %p831 = pneg %p187
        %p832 = pneg %p184
        %s833 = sand.u32 %s30, 1
        %s834 = scalar_lea.sflag [#allocation5], %s833
        %s835 = sand.u32 %s200, 1
        %s836 = scalar_lea.vmem [#allocation15], %s835
        %p837 = pneg %p213
        %p838 = pneg %p210
        %s839 = sand.u32 %s30, 1
        %s840 = scalar_lea.sflag [#allocation5], %s839
        %s841 = sand.u32 %s226, 1
        %s842 = scalar_lea.vmem [#allocation16], %s841
        %p843 = pneg %p239
        %p844 = pneg %p236
        %s845 = sand.u32 %s30, 1
        %s846 = scalar_lea.sflag [#allocation5], %s845
        %s847 = sand.u32 %s252, 1
        %s848 = smul.addr %s847, 32
        %s849 = scalar_lea.vmem [#allocation17], %s848
        %p850 = pneg %p265
        %p851 = pneg %p262
        %s852 = sand.u32 %s30, 1
        %s853 = scalar_lea.sflag [#allocation5], %s852
        %s854 = sand.u32 %s278, 1
        %s855 = scalar_lea.vmem [#allocation18], %s854
        %p856 = pneg %p291
        %p857 = pneg %p288
        %s858 = sand.u32 %s30, 1
        %s859 = scalar_lea.sflag [#allocation5], %s858
        %s860 = sand.u32 %s304, 1
        %s861 = scalar_lea.vmem [#allocation19], %s860
        %p862 = pneg %p317
        %p863 = pneg %p314
        %s864 = sand.u32 %s30, 1
        %s865 = scalar_lea.sflag [#allocation5], %s864
        %s866 = sand.u32 %s330, 1
        %s867 = smul.addr %s866, 32
        %s868 = scalar_lea.vmem [#allocation20], %s867
        %p869 = pneg %p343
        %p870 = pneg %p340
        %s871 = sand.u32 %s30, 1
        %s872 = scalar_lea.sflag [#allocation5], %s871
        %s873 = sand.u32 %s356, 1
        %s874 = scalar_lea.vmem [#allocation21], %s873
        %p875 = pneg %p369
        %p876 = pneg %p366
        %s877 = sand.u32 %s30, 1
        %s878 = scalar_lea.sflag [#allocation5], %s877
        %s879 = sand.u32 %s382, 1
        %s880 = scalar_lea.vmem [#allocation22], %s879
        %p881 = pneg %p395
        %p882 = pneg %p392
        %p883 = pneg %p416
        %p884 = pneg %p413
        %p885 = scmp.eq.s32.totalorder %s30, 0
        // Predicated region
        $region141: #{tpu_custom_call.1} parent=79 // pred_check
          %p886 = pneg %p885
        $region142: #{tpu_custom_call.1} parent=79 // pred_check_branch
          %888 = sbr.rel (%p886) target = $region144
        $region143: #{tpu_custom_call.1} parent=79 // pred_region
          %v889 = vld [vmem:[#allocation10] sm:$0xff]
          %v890 = vld [vmem:[#allocation10 + $0x8] sm:$0xff]
          %vm891 = vcmask 261120
          %892 = vst.msk [vmem:[#allocation2] sm:$0xff] %vm891, %v889
          %893 = vst.msk [vmem:[#allocation2 + $0x8] sm:$0xff] %vm891, %v890
          %894 = vst.msk [vmem:[#allocation3] sm:$0xff] %vm891, %v889
          %895 = vst.msk [vmem:[#allocation3 + $0x8] sm:$0xff] %vm891, %v890
        $region144: #{tpu_custom_call.1} parent=79 // pred_fallthru
          _
        %v896 = vld [vmem:[#allocation2] sm:$0xff]
        %v897 = vld [vmem:[#allocation2 + $0x8] sm:$0xff]
        %v898 = vmul.f32 %v896, %v896
        %v899 = vmul.f32 %v897, %v897
        %902 = vrot.lane.b32.xlu0 %v898, 32
        %v903 = vpop.permute.xlu0 %902
        %904 = vrot.lane.b32.xlu0 %v899, 32
        %v905 = vpop.permute.xlu0 %904
        %vm908 = vcmask 261120
        %v909 = vsel %vm908, %v896, %v903
        %v910 = vsel %vm908, %v897, %v905
        %v911 = vld [vmem:[%s717] sm:$0xff]
        %v912 = vld [vmem:[%s717 + $0x8] sm:$0xff]
        %v913 = vld [vmem:[%s717 + $0x10] sm:$0xff]
        %v914 = vld [vmem:[%s717 + $0x18] sm:$0xff]
        %v915 = vld [vmem:[%s717 + $0x20] sm:$0xff]
        %v916 = vld [vmem:[%s717 + $0x28] sm:$0xff]
        %v917 = vld [vmem:[%s717 + $0x30] sm:$0xff]
        %v918 = vld [vmem:[%s717 + $0x38] sm:$0xff]
        %v919 = vld [vmem:[%s725] sm:$0x1]
        %v921 = vlaneseq
        %v922 = vshrl.u32 %v921, 7
        %v923 = vsub.s32 0, %v922
        %v924 = vrot.slane %v919, %v923
        %v927 = vsel %vm908, %v896, 0
        %v930 = vsel %vm908, %v897, 0
        %932 = vmatprep.subr.mxu0 0.0
        %933 = vmatpush1.msra.mxu0 %v911
        %934 = vmatprep.subr.mxu0 0.0
        %935 = vmatpush1.msra.mxu0 %v912
        %936 = vmatprep.subr.mxu0 0.0
        %937 = vmatpush1.msra.mxu0 %v913
        %938 = vmatprep.subr.mxu0 0.0
        %939 = vmatpush1.msra.mxu0 %v914
        %940 = vmatprep.subr.mxu0 0.0
        %941 = vmatpush1.msra.mxu0 0.0
        %942 = vmatprep.subr.mxu0 0.0
        %943 = vmatpush1.msra.mxu0 0.0
        %944 = vmatprep.subr.mxu0 0.0
        %945 = vmatpush1.msra.mxu0 0.0
        %946 = vmatprep.subr.mxu0 0.0
        %947 = vmatpush1.msra.mxu0 0.0
        %948 = vmatprep.subr.mxu0 0.0
        %949 = vmatpush1.msra.mxu0 0.0
        %950 = vmatprep.subr.mxu0 0.0
        %951 = vmatpush1.msra.mxu0 0.0
        %952 = vmatprep.subr.mxu0 0.0
        %953 = vmatpush1.msra.mxu0 0.0
        %954 = vmatprep.subr.mxu0 0.0
        %955 = vmatpush1.msra.mxu0 0.0
        %956 = vmatprep.subr.mxu0 0.0
        %957 = vmatpush1.msra.mxu0 0.0
        %958 = vmatprep.subr.mxu0 0.0
        %959 = vmatpush1.msra.mxu0 0.0
        %960 = vmatprep.subr.mxu0 0.0
        %961 = vmatpush1.msra.mxu0 0.0
        %962 = vmatprep.subr.mxu0 0.0
        %963 = vmatpush1.msra.mxu0 0.0
        %964 = vmatprep.subr.mxu0 0.0
        %965 = vmatpush1.msra.mxu0 0.0
        %966 = vmatprep.subr.mxu0 0.0
        %967 = vmatpush1.msra.mxu0 0.0
        %968 = vmatprep.subr.mxu0 0.0
        %969 = vmatpush1.msra.mxu0 0.0
        %970 = vmatprep.subr.mxu0 0.0
        %971 = vmatpush1.msra.mxu0 0.0
        %972 = vmatprep.subr.mxu0 0.0
        %973 = vmatpush1.msra.mxu0 0.0
        %974 = vmatprep.subr.mxu0 0.0
        %975 = vmatpush1.msra.mxu0 0.0
        %976 = vmatprep.subr.mxu0 0.0
        %977 = vmatpush1.msra.mxu0 0.0
        %978 = vmatprep.subr.mxu0 0.0
        %979 = vmatpush1.msra.mxu0 0.0
        %980 = vmatprep.subr.mxu0 0.0
        %981 = vmatpush1.msra.mxu0 0.0
        %982 = vmatprep.subr.mxu0 0.0
        %983 = vmatpush1.msra.mxu0 0.0
        %984 = vmatprep.subr.mxu0 0.0
        %985 = vmatpush1.msra.mxu0 0.0
        %986 = vmatprep.subr.mxu0 0.0
        %987 = vmatpush1.msra.mxu0 0.0
        %988 = vmatprep.subr.mxu0 0.0
        %989 = vmatpush1.msra.mxu0 0.0
        %990 = vmatprep.subr.mxu0 0.0
        %991 = vmatpush1.msra.mxu0 0.0
        %992 = vmatprep.subr.mxu0 0.0
        %993 = vmatpush1.msra.mxu0 0.0
        %994 = vmatprep.subr.mxu0 0.0
        %995 = vmatpush1.msra.mxu0 0.0
        %996 = vmatprep.mubr.f32.mxu0 0.0
        %997 = vmatmul.mubr.f32.gmra.mrb[0].mxu0 %v927
        %v998 = vpop.f32.mrb[0].mxu0
        %v999 = vadd.f32 %v924, %v998
        %v1000 = vpop.f32.mrb[0].mxu0
        %1001 = vmatprep.mubr.f32.mxu0 0.0
        %1002 = vmatmul.mubr.f32.gmra.mrb[0].mxu0 %v930
        %v1003 = vpop.f32.mrb[0].mxu0
        %v1004 = vadd.f32 %v924, %v1003
        %v1005 = vpop.f32.mrb[0].mxu0
        %1006 = vdwg.mxu0
        %v1007 = vld [vmem:[#allocation4] sm:$0xff]
        %v1008 = vld [vmem:[#allocation4 + $0x8] sm:$0xff]
        %v1009 = vld [vmem:[%s734] sm:$0xff]
        %v1010 = vld [vmem:[%s734 + $0x8] sm:$0xff]
        %v1011 = vld [vmem:[%s734 + $0x10] sm:$0xff]
        %v1012 = vld [vmem:[%s734 + $0x18] sm:$0xff]
        %v1013 = vld [vmem:[%s742] sm:$0x1]
        %v1014 = vld [vmem:[%s750] sm:$0x1]
        %vm1015 = vcmask 130048
        %v1017 = vsel %vm1015, %v1007, 0
        %v1020 = vsel %vm1015, %v1008, 0
        %1022 = vmatprep.subr.mxu0 0.0
        %1023 = vmatpush1.msra.mxu0 %v909
        %1024 = vmatprep.subr.mxu0 0.0
        %1025 = vmatpush1.msra.mxu0 %v910
        %1026 = vmatprep.subr.mxu0 0.0
        %1027 = vmatpush1.msra.mxu0 0.0
        %1028 = vmatprep.subr.mxu0 0.0
        %1029 = vmatpush1.msra.mxu0 0.0
        %1030 = vmatprep.subr.mxu0 0.0
        %1031 = vmatpush1.msra.mxu0 0.0
        %1032 = vmatprep.subr.mxu0 0.0
        %1033 = vmatpush1.msra.mxu0 0.0
        %1034 = vmatprep.subr.mxu0 0.0
        %1035 = vmatpush1.msra.mxu0 0.0
        %1036 = vmatprep.subr.mxu0 0.0
        %1037 = vmatpush1.msra.mxu0 0.0
        %1038 = vmatprep.subr.mxu0 0.0
        %1039 = vmatpush1.msra.mxu0 0.0
        %1040 = vmatprep.subr.mxu0 0.0
        %1041 = vmatpush1.msra.mxu0 0.0
        %1042 = vmatprep.subr.mxu0 0.0
        %1043 = vmatpush1.msra.mxu0 0.0
        %1044 = vmatprep.subr.mxu0 0.0
        %1045 = vmatpush1.msra.mxu0 0.0
        %1046 = vmatprep.subr.mxu0 0.0
        %1047 = vmatpush1.msra.mxu0 0.0
        %1048 = vmatprep.subr.mxu0 0.0
        %1049 = vmatpush1.msra.mxu0 0.0
        %1050 = vmatprep.subr.mxu0 0.0
        %1051 = vmatpush1.msra.mxu0 0.0
        %1052 = vmatprep.subr.mxu0 0.0
        %1053 = vmatpush1.msra.mxu0 0.0
        %1054 = vmatprep.subr.mxu0 0.0
        %1055 = vmatpush1.msra.mxu0 0.0
        %1056 = vmatprep.subr.mxu0 0.0
        %1057 = vmatpush1.msra.mxu0 0.0
        %1058 = vmatprep.subr.mxu0 0.0
        %1059 = vmatpush1.msra.mxu0 0.0
        %1060 = vmatprep.subr.mxu0 0.0
        %1061 = vmatpush1.msra.mxu0 0.0
        %1062 = vmatprep.subr.mxu0 0.0
        %1063 = vmatpush1.msra.mxu0 0.0
        %1064 = vmatprep.subr.mxu0 0.0
        %1065 = vmatpush1.msra.mxu0 0.0
        %1066 = vmatprep.subr.mxu0 0.0
        %1067 = vmatpush1.msra.mxu0 0.0
        %1068 = vmatprep.subr.mxu0 0.0
        %1069 = vmatpush1.msra.mxu0 0.0
        %1070 = vmatprep.subr.mxu0 0.0
        %1071 = vmatpush1.msra.mxu0 0.0
        %1072 = vmatprep.subr.mxu0 0.0
        %1073 = vmatpush1.msra.mxu0 0.0
        %1074 = vmatprep.subr.mxu0 0.0
        %1075 = vmatpush1.msra.mxu0 0.0
        %1076 = vmatprep.subr.mxu0 0.0
        %1077 = vmatpush1.msra.mxu0 0.0
        %1078 = vmatprep.subr.mxu0 0.0
        %1079 = vmatpush1.msra.mxu0 0.0
        %1080 = vmatprep.subr.mxu0 0.0
        %1081 = vmatpush1.msra.mxu0 0.0
        %1082 = vmatprep.subr.mxu0 0.0
        %1083 = vmatpush1.msra.mxu0 0.0
        %1084 = vmatprep.subr.mxu0 0.0
        %1085 = vmatpush1.msra.mxu0 0.0
        %1086 = vmatprep.mubr.f32.mxu0 0.0
        %1087 = vmatmul.mubr.f32.gmra.mrb[0].mxu0 %v1017
        %v1088 = vpop.f32.mrb[0].mxu0
        %v1089 = vadd.f32 0.0, %v1088
        %v1090 = vpop.f32.mrb[0].mxu0
        %1091 = vmatprep.mubr.f32.mxu0 0.0
        %1092 = vmatmul.mubr.f32.gmra.mrb[0].mxu0 %v1020
        %v1093 = vpop.f32.mrb[0].mxu0
        %v1094 = vadd.f32 0.0, %v1093
        %v1095 = vpop.f32.mrb[0].mxu0
        %1096 = vdwg.mxu0
        %vm1097 = vcmask 523264
        %v1099 = vsel %vm1097, %v1089, 0
        %v1102 = vsel %vm1097, %v1094, 0
        %1104 = vmatprep.subr.mxu0 0.0
        %1105 = vmatpush1.msra.mxu0 %v911
        %1106 = vmatprep.subr.mxu0 0.0
        %1107 = vmatpush1.msra.mxu0 %v912
        %1108 = vmatprep.subr.mxu0 0.0
        %1109 = vmatpush1.msra.mxu0 %v913
        %1110 = vmatprep.subr.mxu0 0.0
        %1111 = vmatpush1.msra.mxu0 %v914
        %1112 = vmatprep.subr.mxu0 0.0
        %1113 = vmatpush1.msra.mxu0 %v915
        %1114 = vmatprep.subr.mxu0 0.0
        %1115 = vmatpush1.msra.mxu0 %v916
        %1116 = vmatprep.subr.mxu0 0.0
        %1117 = vmatpush1.msra.mxu0 %v917
        %1118 = vmatprep.subr.mxu0 0.0
        %1119 = vmatpush1.msra.mxu0 %v918
        %1120 = vmatprep.subr.mxu0 0.0
        %1121 = vmatpush1.msra.mxu0 0.0
        %1122 = vmatprep.subr.mxu0 0.0
        %1123 = vmatpush1.msra.mxu0 0.0
        %1124 = vmatprep.subr.mxu0 0.0
        %1125 = vmatpush1.msra.mxu0 0.0
        %1126 = vmatprep.subr.mxu0 0.0
        %1127 = vmatpush1.msra.mxu0 0.0
        %1128 = vmatprep.subr.mxu0 0.0
        %1129 = vmatpush1.msra.mxu0 0.0
        %1130 = vmatprep.subr.mxu0 0.0
        %1131 = vmatpush1.msra.mxu0 0.0
        %1132 = vmatprep.subr.mxu0 0.0
        %1133 = vmatpush1.msra.mxu0 0.0
        %1134 = vmatprep.subr.mxu0 0.0
        %1135 = vmatpush1.msra.mxu0 0.0
        %1136 = vmatprep.subr.mxu0 0.0
        %1137 = vmatpush1.msra.mxu0 0.0
        %1138 = vmatprep.subr.mxu0 0.0
        %1139 = vmatpush1.msra.mxu0 0.0
        %1140 = vmatprep.subr.mxu0 0.0
        %1141 = vmatpush1.msra.mxu0 0.0
        %1142 = vmatprep.subr.mxu0 0.0
        %1143 = vmatpush1.msra.mxu0 0.0
        %1144 = vmatprep.subr.mxu0 0.0
        %1145 = vmatpush1.msra.mxu0 0.0
        %1146 = vmatprep.subr.mxu0 0.0
        %1147 = vmatpush1.msra.mxu0 0.0
        %1148 = vmatprep.subr.mxu0 0.0
        %1149 = vmatpush1.msra.mxu0 0.0
        %1150 = vmatprep.subr.mxu0 0.0
        %1151 = vmatpush1.msra.mxu0 0.0
        %1152 = vmatprep.subr.mxu0 0.0
        %1153 = vmatpush1.msra.mxu0 0.0
        %1154 = vmatprep.subr.mxu0 0.0
        %1155 = vmatpush1.msra.mxu0 0.0
        %1156 = vmatprep.subr.mxu0 0.0
        %1157 = vmatpush1.msra.mxu0 0.0
        %1158 = vmatprep.subr.mxu0 0.0
        %1159 = vmatpush1.msra.mxu0 0.0
        %1160 = vmatprep.subr.mxu0 0.0
        %1161 = vmatpush1.msra.mxu0 0.0
        %1162 = vmatprep.subr.mxu0 0.0
        %1163 = vmatpush1.msra.mxu0 0.0
        %1164 = vmatprep.subr.mxu0 0.0
        %1165 = vmatpush1.msra.mxu0 0.0
        %1166 = vmatprep.subr.mxu0 0.0
        %1167 = vmatpush1.msra.mxu0 0.0
        %1168 = vmatprep.mubr.f32.mxu0 0.0
        %1169 = vmatmul.mubr.f32.gmra.mrb[0].mxu0 %v1099
        %v1170 = vpop.f32.mrb[0].mxu0
        %v1171 = vadd.f32 %v999, %v1170
        %v1172 = vpop.f32.mrb[0].mxu0
        %1173 = vmatprep.mubr.f32.mxu0 0.0
        %1174 = vmatmul.mubr.f32.gmra.mrb[0].mxu0 %v1102
        %v1175 = vpop.f32.mrb[0].mxu0
        %v1176 = vadd.f32 %v1004, %v1175
        %v1177 = vpop.f32.mrb[0].mxu0
        %1178 = vdwg.mxu0
        %v1180 = vlaneseq
        %v1181 = vshrl.u32 %v1180, 7
        %v1182 = vsub.s32 0, %v1181
        %v1183 = vrot.slane %v1013, %v1182
        %v1186 = vsel %vm908, %v1171, 0
        %v1189 = vsel %vm908, %v1176, 0
        %1191 = vmatprep.subr.mxu0 0.0
        %1192 = vmatpush1.msra.mxu0 %v1009
        %1193 = vmatprep.subr.mxu0 0.0
        %1194 = vmatpush1.msra.mxu0 %v1010
        %1195 = vmatprep.subr.mxu0 0.0
        %1196 = vmatpush1.msra.mxu0 %v1011
        %1197 = vmatprep.subr.mxu0 0.0
        %1198 = vmatpush1.msra.mxu0 %v1012
        %1199 = vmatprep.subr.mxu0 0.0
        %1200 = vmatpush1.msra.mxu0 0.0
        %1201 = vmatprep.subr.mxu0 0.0
        %1202 = vmatpush1.msra.mxu0 0.0
        %1203 = vmatprep.subr.mxu0 0.0
        %1204 = vmatpush1.msra.mxu0 0.0
        %1205 = vmatprep.subr.mxu0 0.0
        %1206 = vmatpush1.msra.mxu0 0.0
        %1207 = vmatprep.subr.mxu0 0.0
        %1208 = vmatpush1.msra.mxu0 0.0
        %1209 = vmatprep.subr.mxu0 0.0
        %1210 = vmatpush1.msra.mxu0 0.0
        %1211 = vmatprep.subr.mxu0 0.0
        %1212 = vmatpush1.msra.mxu0 0.0
        %1213 = vmatprep.subr.mxu0 0.0
        %1214 = vmatpush1.msra.mxu0 0.0
        %1215 = vmatprep.subr.mxu0 0.0
        %1216 = vmatpush1.msra.mxu0 0.0
        %1217 = vmatprep.subr.mxu0 0.0
        %1218 = vmatpush1.msra.mxu0 0.0
        %1219 = vmatprep.subr.mxu0 0.0
        %1220 = vmatpush1.msra.mxu0 0.0
        %1221 = vmatprep.subr.mxu0 0.0
        %1222 = vmatpush1.msra.mxu0 0.0
        %1223 = vmatprep.subr.mxu0 0.0
        %1224 = vmatpush1.msra.mxu0 0.0
        %1225 = vmatprep.subr.mxu0 0.0
        %1226 = vmatpush1.msra.mxu0 0.0
        %1227 = vmatprep.subr.mxu0 0.0
        %1228 = vmatpush1.msra.mxu0 0.0
        %1229 = vmatprep.subr.mxu0 0.0
        %1230 = vmatpush1.msra.mxu0 0.0
        %1231 = vmatprep.subr.mxu0 0.0
        %1232 = vmatpush1.msra.mxu0 0.0
        %1233 = vmatprep.subr.mxu0 0.0
        %1234 = vmatpush1.msra.mxu0 0.0
        %1235 = vmatprep.subr.mxu0 0.0
        %1236 = vmatpush1.msra.mxu0 0.0
        %1237 = vmatprep.subr.mxu0 0.0
        %1238 = vmatpush1.msra.mxu0 0.0
        %1239 = vmatprep.subr.mxu0 0.0
        %1240 = vmatpush1.msra.mxu0 0.0
        %1241 = vmatprep.subr.mxu0 0.0
        %1242 = vmatpush1.msra.mxu0 0.0
        %1243 = vmatprep.subr.mxu0 0.0
        %1244 = vmatpush1.msra.mxu0 0.0
        %1245 = vmatprep.subr.mxu0 0.0
        %1246 = vmatpush1.msra.mxu0 0.0
        %1247 = vmatprep.subr.mxu0 0.0
        %1248 = vmatpush1.msra.mxu0 0.0
        %1249 = vmatprep.subr.mxu0 0.0
        %1250 = vmatpush1.msra.mxu0 0.0
        %1251 = vmatprep.subr.mxu0 0.0
        %1252 = vmatpush1.msra.mxu0 0.0
        %1253 = vmatprep.subr.mxu0 0.0
        %1254 = vmatpush1.msra.mxu0 0.0
        %1255 = vmatprep.mubr.f32.mxu0 0.0
        %1256 = vmatmul.mubr.f32.gmra.mrb[0].mxu0 %v1186
        %v1257 = vpop.f32.mrb[0].mxu0
        %v1258 = vadd.f32 %v1183, %v1257
        %v1259 = vpop.f32.mrb[0].mxu0
        %1260 = vmatprep.mubr.f32.mxu0 0.0
        %1261 = vmatmul.mubr.f32.gmra.mrb[0].mxu0 %v1189
        %v1262 = vpop.f32.mrb[0].mxu0
        %v1263 = vadd.f32 %v1183, %v1262
        %v1264 = vpop.f32.mrb[0].mxu0
        %1265 = vdwg.mxu0
        %v1266 = vtanh.pop %v1258
        %v1267 = vtanh.pop %v1263
        %v1269 = vlaneseq
        %v1270 = vshrl.u32 %v1269, 7
        %v1271 = vsub.s32 0, %v1270
        %v1272 = vrot.slane %v1014, %v1271
        %v1274 = vmul.f32 %v1266, %v1272
        %v1275 = vmul.f32 %v1267, %v1272
        %v1276 = vsel %vm908, %v1274, 0.0
        %1277 = vadd.xlane.f32.xlu0 %v1276
        %v1278 = vpop.xlane.xlu0 %1277
        %v1279 = vsel %vm908, %v1275, 0.0
        %1280 = vadd.xlane.f32.xlu0 %v1279
        %v1281 = vpop.xlane.xlu0 %1280
        %vm1282 = vcmask 7168
        %v1283 = vsel %vm1282, %v1278, 0.0
        %v1284 = vsel %vm1282, %v1281, 0.0
        %v1285 = vadd.f32 %v1283, %v1284
        %1286 = vadd.xlane.f32.xlu0 %v1285
        %v1287 = vpop.xlane.xlu0 %1286
        %v1288 = vrot.slane %v1287, 4
        %v1289 = vadd.f32 %v1287, %v1288
        %v1290 = vrot.slane %v1289, 2
        %v1291 = vadd.f32 %v1289, %v1290
        %v1292 = vrot.slane %v1291, 1
        %v1293 = vadd.f32 %v1291, %v1292
        %s1294 = vtos %v1293
        %v1295 = vrcp.pop 16.0
        %s1296 = vtos %v1295
        %s1297 = smul.f32 %s1294, %s1296
        %v1298 = vld [vmem:[#allocation7] sm:$0xff]
        %v1299 = vld [vmem:[#allocation7 + $0x8] sm:$0xff]
        %v1300 = vld [vmem:[%s784] sm:$0xff]
        %v1301 = vld [vmem:[%s784 + $0x8] sm:$0xff]
        %v1302 = vld [vmem:[%s784 + $0x10] sm:$0xff]
        %v1303 = vld [vmem:[%s784 + $0x18] sm:$0xff]
        %v1304 = vld [vmem:[%s792] sm:$0x1]
        %v1305 = vld [vmem:[%s800] sm:$0x1]
        %v1307 = vsel %vm1015, %v1298, 0
        %v1310 = vsel %vm1015, %v1299, 0
        %1312 = vmatprep.subr.mxu0 0.0
        %1313 = vmatpush1.msra.mxu0 %v909
        %1314 = vmatprep.subr.mxu0 0.0
        %1315 = vmatpush1.msra.mxu0 %v910
        %1316 = vmatprep.subr.mxu0 0.0
        %1317 = vmatpush1.msra.mxu0 0.0
        %1318 = vmatprep.subr.mxu0 0.0
        %1319 = vmatpush1.msra.mxu0 0.0
        %1320 = vmatprep.subr.mxu0 0.0
        %1321 = vmatpush1.msra.mxu0 0.0
        %1322 = vmatprep.subr.mxu0 0.0
        %1323 = vmatpush1.msra.mxu0 0.0
        %1324 = vmatprep.subr.mxu0 0.0
        %1325 = vmatpush1.msra.mxu0 0.0
        %1326 = vmatprep.subr.mxu0 0.0
        %1327 = vmatpush1.msra.mxu0 0.0
        %1328 = vmatprep.subr.mxu0 0.0
        %1329 = vmatpush1.msra.mxu0 0.0
        %1330 = vmatprep.subr.mxu0 0.0
        %1331 = vmatpush1.msra.mxu0 0.0
        %1332 = vmatprep.subr.mxu0 0.0
        %1333 = vmatpush1.msra.mxu0 0.0
        %1334 = vmatprep.subr.mxu0 0.0
        %1335 = vmatpush1.msra.mxu0 0.0
        %1336 = vmatprep.subr.mxu0 0.0
        %1337 = vmatpush1.msra.mxu0 0.0
        %1338 = vmatprep.subr.mxu0 0.0
        %1339 = vmatpush1.msra.mxu0 0.0
        %1340 = vmatprep.subr.mxu0 0.0
        %1341 = vmatpush1.msra.mxu0 0.0
        %1342 = vmatprep.subr.mxu0 0.0
        %1343 = vmatpush1.msra.mxu0 0.0
        %1344 = vmatprep.subr.mxu0 0.0
        %1345 = vmatpush1.msra.mxu0 0.0
        %1346 = vmatprep.subr.mxu0 0.0
        %1347 = vmatpush1.msra.mxu0 0.0
        %1348 = vmatprep.subr.mxu0 0.0
        %1349 = vmatpush1.msra.mxu0 0.0
        %1350 = vmatprep.subr.mxu0 0.0
        %1351 = vmatpush1.msra.mxu0 0.0
        %1352 = vmatprep.subr.mxu0 0.0
        %1353 = vmatpush1.msra.mxu0 0.0
        %1354 = vmatprep.subr.mxu0 0.0
        %1355 = vmatpush1.msra.mxu0 0.0
        %1356 = vmatprep.subr.mxu0 0.0
        %1357 = vmatpush1.msra.mxu0 0.0
        %1358 = vmatprep.subr.mxu0 0.0
        %1359 = vmatpush1.msra.mxu0 0.0
        %1360 = vmatprep.subr.mxu0 0.0
        %1361 = vmatpush1.msra.mxu0 0.0
        %1362 = vmatprep.subr.mxu0 0.0
        %1363 = vmatpush1.msra.mxu0 0.0
        %1364 = vmatprep.subr.mxu0 0.0
        %1365 = vmatpush1.msra.mxu0 0.0
        %1366 = vmatprep.subr.mxu0 0.0
        %1367 = vmatpush1.msra.mxu0 0.0
        %1368 = vmatprep.subr.mxu0 0.0
        %1369 = vmatpush1.msra.mxu0 0.0
        %1370 = vmatprep.subr.mxu0 0.0
        %1371 = vmatpush1.msra.mxu0 0.0
        %1372 = vmatprep.subr.mxu0 0.0
        %1373 = vmatpush1.msra.mxu0 0.0
        %1374 = vmatprep.subr.mxu0 0.0
        %1375 = vmatpush1.msra.mxu0 0.0
        %1376 = vmatprep.mubr.f32.mxu0 0.0
        %1377 = vmatmul.mubr.f32.gmra.mrb[0].mxu0 %v1307
        %v1378 = vpop.f32.mrb[0].mxu0
        %v1379 = vadd.f32 0.0, %v1378
        %v1380 = vpop.f32.mrb[0].mxu0
        %1381 = vmatprep.mubr.f32.mxu0 0.0
        %1382 = vmatmul.mubr.f32.gmra.mrb[0].mxu0 %v1310
        %v1383 = vpop.f32.mrb[0].mxu0
        %v1384 = vadd.f32 0.0, %v1383
        %v1385 = vpop.f32.mrb[0].mxu0
        %1386 = vdwg.mxu0
        %v1388 = vsel %vm1097, %v1379, 0
        %v1391 = vsel %vm1097, %v1384, 0
        %1393 = vmatprep.subr.mxu0 0.0
        %1394 = vmatpush1.msra.mxu0 %v911
        %1395 = vmatprep.subr.mxu0 0.0
        %1396 = vmatpush1.msra.mxu0 %v912
        %1397 = vmatprep.subr.mxu0 0.0
        %1398 = vmatpush1.msra.mxu0 %v913
        %1399 = vmatprep.subr.mxu0 0.0
        %1400 = vmatpush1.msra.mxu0 %v914
        %1401 = vmatprep.subr.mxu0 0.0
        %1402 = vmatpush1.msra.mxu0 %v915
        %1403 = vmatprep.subr.mxu0 0.0
        %1404 = vmatpush1.msra.mxu0 %v916
        %1405 = vmatprep.subr.mxu0 0.0
        %1406 = vmatpush1.msra.mxu0 %v917
        %1407 = vmatprep.subr.mxu0 0.0
        %1408 = vmatpush1.msra.mxu0 %v918
        %1409 = vmatprep.subr.mxu0 0.0
        %1410 = vmatpush1.msra.mxu0 0.0
        %1411 = vmatprep.subr.mxu0 0.0
        %1412 = vmatpush1.msra.mxu0 0.0
        %1413 = vmatprep.subr.mxu0 0.0
        %1414 = vmatpush1.msra.mxu0 0.0
        %1415 = vmatprep.subr.mxu0 0.0
        %1416 = vmatpush1.msra.mxu0 0.0
        %1417 = vmatprep.subr.mxu0 0.0
        %1418 = vmatpush1.msra.mxu0 0.0
        %1419 = vmatprep.subr.mxu0 0.0
        %1420 = vmatpush1.msra.mxu0 0.0
        %1421 = vmatprep.subr.mxu0 0.0
        %1422 = vmatpush1.msra.mxu0 0.0
        %1423 = vmatprep.subr.mxu0 0.0
        %1424 = vmatpush1.msra.mxu0 0.0
        %1425 = vmatprep.subr.mxu0 0.0
        %1426 = vmatpush1.msra.mxu0 0.0
        %1427 = vmatprep.subr.mxu0 0.0
        %1428 = vmatpush1.msra.mxu0 0.0
        %1429 = vmatprep.subr.mxu0 0.0
        %1430 = vmatpush1.msra.mxu0 0.0
        %1431 = vmatprep.subr.mxu0 0.0
        %1432 = vmatpush1.msra.mxu0 0.0
        %1433 = vmatprep.subr.mxu0 0.0
        %1434 = vmatpush1.msra.mxu0 0.0
        %1435 = vmatprep.subr.mxu0 0.0
        %1436 = vmatpush1.msra.mxu0 0.0
        %1437 = vmatprep.subr.mxu0 0.0
        %1438 = vmatpush1.msra.mxu0 0.0
        %1439 = vmatprep.subr.mxu0 0.0
        %1440 = vmatpush1.msra.mxu0 0.0
        %1441 = vmatprep.subr.mxu0 0.0
        %1442 = vmatpush1.msra.mxu0 0.0
        %1443 = vmatprep.subr.mxu0 0.0
        %1444 = vmatpush1.msra.mxu0 0.0
        %1445 = vmatprep.subr.mxu0 0.0
        %1446 = vmatpush1.msra.mxu0 0.0
        %1447 = vmatprep.subr.mxu0 0.0
        %1448 = vmatpush1.msra.mxu0 0.0
        %1449 = vmatprep.subr.mxu0 0.0
        %1450 = vmatpush1.msra.mxu0 0.0
        %1451 = vmatprep.subr.mxu0 0.0
        %1452 = vmatpush1.msra.mxu0 0.0
        %1453 = vmatprep.subr.mxu0 0.0
        %1454 = vmatpush1.msra.mxu0 0.0
        %1455 = vmatprep.subr.mxu0 0.0
        %1456 = vmatpush1.msra.mxu0 0.0
        %1457 = vmatprep.mubr.f32.mxu0 0.0
        %1458 = vmatmul.mubr.f32.gmra.mrb[0].mxu0 %v1388
        %v1459 = vpop.f32.mrb[0].mxu0
        %v1460 = vadd.f32 %v999, %v1459
        %v1461 = vpop.f32.mrb[0].mxu0
        %1462 = vmatprep.mubr.f32.mxu0 0.0
        %1463 = vmatmul.mubr.f32.gmra.mrb[0].mxu0 %v1391
        %v1464 = vpop.f32.mrb[0].mxu0
        %v1465 = vadd.f32 %v1004, %v1464
        %v1466 = vpop.f32.mrb[0].mxu0
        %1467 = vdwg.mxu0
        %v1469 = vlaneseq
        %v1470 = vshrl.u32 %v1469, 7
        %v1471 = vsub.s32 0, %v1470
        %v1472 = vrot.slane %v1304, %v1471
        %v1475 = vsel %vm908, %v1460, 0
        %v1478 = vsel %vm908, %v1465, 0
        %1480 = vmatprep.subr.mxu0 0.0
        %1481 = vmatpush1.msra.mxu0 %v1300
        %1482 = vmatprep.subr.mxu0 0.0
        %1483 = vmatpush1.msra.mxu0 %v1301
        %1484 = vmatprep.subr.mxu0 0.0
        %1485 = vmatpush1.msra.mxu0 %v1302
        %1486 = vmatprep.subr.mxu0 0.0
        %1487 = vmatpush1.msra.mxu0 %v1303
        %1488 = vmatprep.subr.mxu0 0.0
        %1489 = vmatpush1.msra.mxu0 0.0
        %1490 = vmatprep.subr.mxu0 0.0
        %1491 = vmatpush1.msra.mxu0 0.0
        %1492 = vmatprep.subr.mxu0 0.0
        %1493 = vmatpush1.msra.mxu0 0.0
        %1494 = vmatprep.subr.mxu0 0.0
        %1495 = vmatpush1.msra.mxu0 0.0
        %1496 = vmatprep.subr.mxu0 0.0
        %1497 = vmatpush1.msra.mxu0 0.0
        %1498 = vmatprep.subr.mxu0 0.0
        %1499 = vmatpush1.msra.mxu0 0.0
        %1500 = vmatprep.subr.mxu0 0.0
        %1501 = vmatpush1.msra.mxu0 0.0
        %1502 = vmatprep.subr.mxu0 0.0
        %1503 = vmatpush1.msra.mxu0 0.0
        %1504 = vmatprep.subr.mxu0 0.0
        %1505 = vmatpush1.msra.mxu0 0.0
        %1506 = vmatprep.subr.mxu0 0.0
        %1507 = vmatpush1.msra.mxu0 0.0
        %1508 = vmatprep.subr.mxu0 0.0
        %1509 = vmatpush1.msra.mxu0 0.0
        %1510 = vmatprep.subr.mxu0 0.0
        %1511 = vmatpush1.msra.mxu0 0.0
        %1512 = vmatprep.subr.mxu0 0.0
        %1513 = vmatpush1.msra.mxu0 0.0
        %1514 = vmatprep.subr.mxu0 0.0
        %1515 = vmatpush1.msra.mxu0 0.0
        %1516 = vmatprep.subr.mxu0 0.0
        %1517 = vmatpush1.msra.mxu0 0.0
        %1518 = vmatprep.subr.mxu0 0.0
        %1519 = vmatpush1.msra.mxu0 0.0
        %1520 = vmatprep.subr.mxu0 0.0
        %1521 = vmatpush1.msra.mxu0 0.0
        %1522 = vmatprep.subr.mxu0 0.0
        %1523 = vmatpush1.msra.mxu0 0.0
        %1524 = vmatprep.subr.mxu0 0.0
        %1525 = vmatpush1.msra.mxu0 0.0
        %1526 = vmatprep.subr.mxu0 0.0
        %1527 = vmatpush1.msra.mxu0 0.0
        %1528 = vmatprep.subr.mxu0 0.0
        %1529 = vmatpush1.msra.mxu0 0.0
        %1530 = vmatprep.subr.mxu0 0.0
        %1531 = vmatpush1.msra.mxu0 0.0
        %1532 = vmatprep.subr.mxu0 0.0
        %1533 = vmatpush1.msra.mxu0 0.0
        %1534 = vmatprep.subr.mxu0 0.0
        %1535 = vmatpush1.msra.mxu0 0.0
        %1536 = vmatprep.subr.mxu0 0.0
        %1537 = vmatpush1.msra.mxu0 0.0
        %1538 = vmatprep.subr.mxu0 0.0
        %1539 = vmatpush1.msra.mxu0 0.0
        %1540 = vmatprep.subr.mxu0 0.0
        %1541 = vmatpush1.msra.mxu0 0.0
        %1542 = vmatprep.subr.mxu0 0.0
        %1543 = vmatpush1.msra.mxu0 0.0
        %1544 = vmatprep.mubr.f32.mxu0 0.0
        %1545 = vmatmul.mubr.f32.gmra.mrb[0].mxu0 %v1475
        %v1546 = vpop.f32.mrb[0].mxu0
        %v1547 = vadd.f32 %v1472, %v1546
        %v1548 = vpop.f32.mrb[0].mxu0
        %1549 = vmatprep.mubr.f32.mxu0 0.0
        %1550 = vmatmul.mubr.f32.gmra.mrb[0].mxu0 %v1478
        %v1551 = vpop.f32.mrb[0].mxu0
        %v1552 = vadd.f32 %v1472, %v1551
        %v1553 = vpop.f32.mrb[0].mxu0
        %1554 = vdwg.mxu0
        %v1555 = vtanh.pop %v1547
        %v1556 = vtanh.pop %v1552
        %v1558 = vlaneseq
        %v1559 = vshrl.u32 %v1558, 7
        %v1560 = vsub.s32 0, %v1559
        %v1561 = vrot.slane %v1305, %v1560
        %v1563 = vmul.f32 %v1555, %v1561
        %v1564 = vmul.f32 %v1556, %v1561
        %v1565 = vsel %vm908, %v1563, 0.0
        %1566 = vadd.xlane.f32.xlu0 %v1565
        %v1567 = vpop.xlane.xlu0 %1566
        %v1568 = vsel %vm908, %v1564, 0.0
        %1569 = vadd.xlane.f32.xlu0 %v1568
        %v1570 = vpop.xlane.xlu0 %1569
        %v1571 = vsel %vm1282, %v1567, 0.0
        %v1572 = vsel %vm1282, %v1570, 0.0
        %v1573 = vadd.f32 %v1571, %v1572
        %1574 = vadd.xlane.f32.xlu0 %v1573
        %v1575 = vpop.xlane.xlu0 %1574
        %v1576 = vrot.slane %v1575, 4
        %v1577 = vadd.f32 %v1575, %v1576
        %v1578 = vrot.slane %v1577, 2
        %v1579 = vadd.f32 %v1577, %v1578
        %v1580 = vrot.slane %v1579, 1
        %v1581 = vadd.f32 %v1579, %v1580
        %s1582 = vtos %v1581
        %v1583 = vrcp.pop 16.0
        %s1584 = vtos %v1583
        %s1585 = smul.f32 %s1582, %s1584
        %v1586 = vld [vmem:[#allocation9] sm:$0xff]
        %v1587 = vld [vmem:[#allocation9 + $0x8] sm:$0xff]
        %v1588 = vld [vmem:[%s759] sm:$0xff]
        %v1589 = vld [vmem:[%s759 + $0x8] sm:$0xff]
        %v1590 = vld [vmem:[%s759 + $0x10] sm:$0xff]
        %v1591 = vld [vmem:[%s759 + $0x18] sm:$0xff]
        %v1592 = vld [vmem:[%s767] sm:$0x1]
        %v1593 = vld [vmem:[%s775] sm:$0x1]
        %v1595 = vsel %vm1015, %v1586, 0
        %v1598 = vsel %vm1015, %v1587, 0
        %1600 = vmatprep.subr.mxu0 0.0
        %1601 = vmatpush1.msra.mxu0 %v909
        %1602 = vmatprep.subr.mxu0 0.0
        %1603 = vmatpush1.msra.mxu0 %v910
        %1604 = vmatprep.subr.mxu0 0.0
        %1605 = vmatpush1.msra.mxu0 0.0
        %1606 = vmatprep.subr.mxu0 0.0
        %1607 = vmatpush1.msra.mxu0 0.0
        %1608 = vmatprep.subr.mxu0 0.0
        %1609 = vmatpush1.msra.mxu0 0.0
        %1610 = vmatprep.subr.mxu0 0.0
        %1611 = vmatpush1.msra.mxu0 0.0
        %1612 = vmatprep.subr.mxu0 0.0
        %1613 = vmatpush1.msra.mxu0 0.0
        %1614 = vmatprep.subr.mxu0 0.0
        %1615 = vmatpush1.msra.mxu0 0.0
        %1616 = vmatprep.subr.mxu0 0.0
        %1617 = vmatpush1.msra.mxu0 0.0
        %1618 = vmatprep.subr.mxu0 0.0
        %1619 = vmatpush1.msra.mxu0 0.0
        %1620 = vmatprep.subr.mxu0 0.0
        %1621 = vmatpush1.msra.mxu0 0.0
        %1622 = vmatprep.subr.mxu0 0.0
        %1623 = vmatpush1.msra.mxu0 0.0
        %1624 = vmatprep.subr.mxu0 0.0
        %1625 = vmatpush1.msra.mxu0 0.0
        %1626 = vmatprep.subr.mxu0 0.0
        %1627 = vmatpush1.msra.mxu0 0.0
        %1628 = vmatprep.subr.mxu0 0.0
        %1629 = vmatpush1.msra.mxu0 0.0
        %1630 = vmatprep.subr.mxu0 0.0
        %1631 = vmatpush1.msra.mxu0 0.0
        %1632 = vmatprep.subr.mxu0 0.0
        %1633 = vmatpush1.msra.mxu0 0.0
        %1634 = vmatprep.subr.mxu0 0.0
        %1635 = vmatpush1.msra.mxu0 0.0
        %1636 = vmatprep.subr.mxu0 0.0
        %1637 = vmatpush1.msra.mxu0 0.0
        %1638 = vmatprep.subr.mxu0 0.0
        %1639 = vmatpush1.msra.mxu0 0.0
        %1640 = vmatprep.subr.mxu0 0.0
        %1641 = vmatpush1.msra.mxu0 0.0
        %1642 = vmatprep.subr.mxu0 0.0
        %1643 = vmatpush1.msra.mxu0 0.0
        %1644 = vmatprep.subr.mxu0 0.0
        %1645 = vmatpush1.msra.mxu0 0.0
        %1646 = vmatprep.subr.mxu0 0.0
        %1647 = vmatpush1.msra.mxu0 0.0
        %1648 = vmatprep.subr.mxu0 0.0
        %1649 = vmatpush1.msra.mxu0 0.0
        %1650 = vmatprep.subr.mxu0 0.0
        %1651 = vmatpush1.msra.mxu0 0.0
        %1652 = vmatprep.subr.mxu0 0.0
        %1653 = vmatpush1.msra.mxu0 0.0
        %1654 = vmatprep.subr.mxu0 0.0
        %1655 = vmatpush1.msra.mxu0 0.0
        %1656 = vmatprep.subr.mxu0 0.0
        %1657 = vmatpush1.msra.mxu0 0.0
        %1658 = vmatprep.subr.mxu0 0.0
        %1659 = vmatpush1.msra.mxu0 0.0
        %1660 = vmatprep.subr.mxu0 0.0
        %1661 = vmatpush1.msra.mxu0 0.0
        %1662 = vmatprep.subr.mxu0 0.0
        %1663 = vmatpush1.msra.mxu0 0.0
        %1664 = vmatprep.mubr.f32.mxu0 0.0
        %1665 = vmatmul.mubr.f32.gmra.mrb[0].mxu0 %v1595
        %v1666 = vpop.f32.mrb[0].mxu0
        %v1667 = vadd.f32 0.0, %v1666
        %v1668 = vpop.f32.mrb[0].mxu0
        %1669 = vmatprep.mubr.f32.mxu0 0.0
        %1670 = vmatmul.mubr.f32.gmra.mrb[0].mxu0 %v1598
        %v1671 = vpop.f32.mrb[0].mxu0
        %v1672 = vadd.f32 0.0, %v1671
        %v1673 = vpop.f32.mrb[0].mxu0
        %1674 = vdwg.mxu0
        %v1676 = vsel %vm1097, %v1667, 0
        %v1679 = vsel %vm1097, %v1672, 0
        %1681 = vmatprep.subr.mxu0 0.0
        %1682 = vmatpush1.msra.mxu0 %v911
        %1683 = vmatprep.subr.mxu0 0.0
        %1684 = vmatpush1.msra.mxu0 %v912
        %1685 = vmatprep.subr.mxu0 0.0
        %1686 = vmatpush1.msra.mxu0 %v913
        %1687 = vmatprep.subr.mxu0 0.0
        %1688 = vmatpush1.msra.mxu0 %v914
        %1689 = vmatprep.subr.mxu0 0.0
        %1690 = vmatpush1.msra.mxu0 %v915
        %1691 = vmatprep.subr.mxu0 0.0
        %1692 = vmatpush1.msra.mxu0 %v916
        %1693 = vmatprep.subr.mxu0 0.0
        %1694 = vmatpush1.msra.mxu0 %v917
        %1695 = vmatprep.subr.mxu0 0.0
        %1696 = vmatpush1.msra.mxu0 %v918
        %1697 = vmatprep.subr.mxu0 0.0
        %1698 = vmatpush1.msra.mxu0 0.0
        %1699 = vmatprep.subr.mxu0 0.0
        %1700 = vmatpush1.msra.mxu0 0.0
        %1701 = vmatprep.subr.mxu0 0.0
        %1702 = vmatpush1.msra.mxu0 0.0
        %1703 = vmatprep.subr.mxu0 0.0
        %1704 = vmatpush1.msra.mxu0 0.0
        %1705 = vmatprep.subr.mxu0 0.0
        %1706 = vmatpush1.msra.mxu0 0.0
        %1707 = vmatprep.subr.mxu0 0.0
        %1708 = vmatpush1.msra.mxu0 0.0
        %1709 = vmatprep.subr.mxu0 0.0
        %1710 = vmatpush1.msra.mxu0 0.0
        %1711 = vmatprep.subr.mxu0 0.0
        %1712 = vmatpush1.msra.mxu0 0.0
        %1713 = vmatprep.subr.mxu0 0.0
        %1714 = vmatpush1.msra.mxu0 0.0
        %1715 = vmatprep.subr.mxu0 0.0
        %1716 = vmatpush1.msra.mxu0 0.0
        %1717 = vmatprep.subr.mxu0 0.0
        %1718 = vmatpush1.msra.mxu0 0.0
        %1719 = vmatprep.subr.mxu0 0.0
        %1720 = vmatpush1.msra.mxu0 0.0
        %1721 = vmatprep.subr.mxu0 0.0
        %1722 = vmatpush1.msra.mxu0 0.0
        %1723 = vmatprep.subr.mxu0 0.0
        %1724 = vmatpush1.msra.mxu0 0.0
        %1725 = vmatprep.subr.mxu0 0.0
        %1726 = vmatpush1.msra.mxu0 0.0
        %1727 = vmatprep.subr.mxu0 0.0
        %1728 = vmatpush1.msra.mxu0 0.0
        %1729 = vmatprep.subr.mxu0 0.0
        %1730 = vmatpush1.msra.mxu0 0.0
        %1731 = vmatprep.subr.mxu0 0.0
        %1732 = vmatpush1.msra.mxu0 0.0
        %1733 = vmatprep.subr.mxu0 0.0
        %1734 = vmatpush1.msra.mxu0 0.0
        %1735 = vmatprep.subr.mxu0 0.0
        %1736 = vmatpush1.msra.mxu0 0.0
        %1737 = vmatprep.subr.mxu0 0.0
        %1738 = vmatpush1.msra.mxu0 0.0
        %1739 = vmatprep.subr.mxu0 0.0
        %1740 = vmatpush1.msra.mxu0 0.0
        %1741 = vmatprep.subr.mxu0 0.0
        %1742 = vmatpush1.msra.mxu0 0.0
        %1743 = vmatprep.subr.mxu0 0.0
        %1744 = vmatpush1.msra.mxu0 0.0
        %1745 = vmatprep.mubr.f32.mxu0 0.0
        %1746 = vmatmul.mubr.f32.gmra.mrb[0].mxu0 %v1676
        %v1747 = vpop.f32.mrb[0].mxu0
        %v1748 = vadd.f32 %v999, %v1747
        %v1749 = vpop.f32.mrb[0].mxu0
        %1750 = vmatprep.mubr.f32.mxu0 0.0
        %1751 = vmatmul.mubr.f32.gmra.mrb[0].mxu0 %v1679
        %v1752 = vpop.f32.mrb[0].mxu0
        %v1753 = vadd.f32 %v1004, %v1752
        %v1754 = vpop.f32.mrb[0].mxu0
        %1755 = vdwg.mxu0
        %v1757 = vlaneseq
        %v1758 = vshrl.u32 %v1757, 7
        %v1759 = vsub.s32 0, %v1758
        %v1760 = vrot.slane %v1592, %v1759
        %v1763 = vsel %vm908, %v1748, 0
        %v1766 = vsel %vm908, %v1753, 0
        %1768 = vmatprep.subr.mxu0 0.0
        %1769 = vmatpush1.msra.mxu0 %v1588
        %1770 = vmatprep.subr.mxu0 0.0
        %1771 = vmatpush1.msra.mxu0 %v1589
        %1772 = vmatprep.subr.mxu0 0.0
        %1773 = vmatpush1.msra.mxu0 %v1590
        %1774 = vmatprep.subr.mxu0 0.0
        %1775 = vmatpush1.msra.mxu0 %v1591
        %1776 = vmatprep.subr.mxu0 0.0
        %1777 = vmatpush1.msra.mxu0 0.0
        %1778 = vmatprep.subr.mxu0 0.0
        %1779 = vmatpush1.msra.mxu0 0.0
        %1780 = vmatprep.subr.mxu0 0.0
        %1781 = vmatpush1.msra.mxu0 0.0
        %1782 = vmatprep.subr.mxu0 0.0
        %1783 = vmatpush1.msra.mxu0 0.0
        %1784 = vmatprep.subr.mxu0 0.0
        %1785 = vmatpush1.msra.mxu0 0.0
        %1786 = vmatprep.subr.mxu0 0.0
        %1787 = vmatpush1.msra.mxu0 0.0
        %1788 = vmatprep.subr.mxu0 0.0
        %1789 = vmatpush1.msra.mxu0 0.0
        %1790 = vmatprep.subr.mxu0 0.0
        %1791 = vmatpush1.msra.mxu0 0.0
        %1792 = vmatprep.subr.mxu0 0.0
        %1793 = vmatpush1.msra.mxu0 0.0
        %1794 = vmatprep.subr.mxu0 0.0
        %1795 = vmatpush1.msra.mxu0 0.0
        %1796 = vmatprep.subr.mxu0 0.0
        %1797 = vmatpush1.msra.mxu0 0.0
        %1798 = vmatprep.subr.mxu0 0.0
        %1799 = vmatpush1.msra.mxu0 0.0
        %1800 = vmatprep.subr.mxu0 0.0
        %1801 = vmatpush1.msra.mxu0 0.0
        %1802 = vmatprep.subr.mxu0 0.0
        %1803 = vmatpush1.msra.mxu0 0.0
        %1804 = vmatprep.subr.mxu0 0.0
        %1805 = vmatpush1.msra.mxu0 0.0
        %1806 = vmatprep.subr.mxu0 0.0
        %1807 = vmatpush1.msra.mxu0 0.0
        %1808 = vmatprep.subr.mxu0 0.0
        %1809 = vmatpush1.msra.mxu0 0.0
        %1810 = vmatprep.subr.mxu0 0.0
        %1811 = vmatpush1.msra.mxu0 0.0
        %1812 = vmatprep.subr.mxu0 0.0
        %1813 = vmatpush1.msra.mxu0 0.0
        %1814 = vmatprep.subr.mxu0 0.0
        %1815 = vmatpush1.msra.mxu0 0.0
        %1816 = vmatprep.subr.mxu0 0.0
        %1817 = vmatpush1.msra.mxu0 0.0
        %1818 = vmatprep.subr.mxu0 0.0
        %1819 = vmatpush1.msra.mxu0 0.0
        %1820 = vmatprep.subr.mxu0 0.0
        %1821 = vmatpush1.msra.mxu0 0.0
        %1822 = vmatprep.subr.mxu0 0.0
        %1823 = vmatpush1.msra.mxu0 0.0
        %1824 = vmatprep.subr.mxu0 0.0
        %1825 = vmatpush1.msra.mxu0 0.0
        %1826 = vmatprep.subr.mxu0 0.0
        %1827 = vmatpush1.msra.mxu0 0.0
        %1828 = vmatprep.subr.mxu0 0.0
        %1829 = vmatpush1.msra.mxu0 0.0
        %1830 = vmatprep.subr.mxu0 0.0
        %1831 = vmatpush1.msra.mxu0 0.0
        %1832 = vmatprep.mubr.f32.mxu0 0.0
        %1833 = vmatmul.mubr.f32.gmra.mrb[0].mxu0 %v1763
        %v1834 = vpop.f32.mrb[0].mxu0
        %v1835 = vadd.f32 %v1760, %v1834
        %v1836 = vpop.f32.mrb[0].mxu0
        %1837 = vmatprep.mubr.f32.mxu0 0.0
        %1838 = vmatmul.mubr.f32.gmra.mrb[0].mxu0 %v1766
        %v1839 = vpop.f32.mrb[0].mxu0
        %v1840 = vadd.f32 %v1760, %v1839
        %v1841 = vpop.f32.mrb[0].mxu0
        %1842 = vdwg.mxu0
        %v1843 = vtanh.pop %v1835
        %v1844 = vtanh.pop %v1840
        %v1846 = vlaneseq
        %v1847 = vshrl.u32 %v1846, 7
        %v1848 = vsub.s32 0, %v1847
        %v1849 = vrot.slane %v1593, %v1848
        %v1851 = vmul.f32 %v1843, %v1849
        %v1852 = vmul.f32 %v1844, %v1849
        %v1853 = vsel %vm908, %v1851, 0.0
        %1854 = vadd.xlane.f32.xlu0 %v1853
        %v1855 = vpop.xlane.xlu0 %1854
        %v1856 = vsel %vm908, %v1852, 0.0
        %1857 = vadd.xlane.f32.xlu0 %v1856
        %v1858 = vpop.xlane.xlu0 %1857
        %v1859 = vsel %vm1282, %v1855, 0.0
        %v1860 = vsel %vm1282, %v1858, 0.0
        %v1861 = vadd.f32 %v1859, %v1860
        %1862 = vadd.xlane.f32.xlu0 %v1861
        %v1863 = vpop.xlane.xlu0 %1862
        %v1864 = vrot.slane %v1863, 4
        %v1865 = vadd.f32 %v1863, %v1864
        %v1866 = vrot.slane %v1865, 2
        %v1867 = vadd.f32 %v1865, %v1866
        %v1868 = vrot.slane %v1867, 1
        %v1869 = vadd.f32 %v1867, %v1868
        %s1870 = vtos %v1869
        %v1871 = vrcp.pop 16.0
        %s1872 = vtos %v1871
        %s1873 = smul.f32 %s1870, %s1872
        %s1874 = smax.f32 %s1297, %s1873
        %s1875 = smax.f32 %s1874, %s1585
        %s1876 = ssub.f32 %s1297, %s1875
        %v1877 = vstv %s1876
        %v1878 = vmul.f32 %v1877, 1.442695
        %v1879 = vpow.pop %v1878
        %s1880 = vtos %v1879
        %s1881 = ssub.f32 %s1873, %s1875
        %v1882 = vstv %s1881
        %v1883 = vmul.f32 %v1882, 1.442695
        %v1884 = vpow.pop %v1883
        %s1885 = vtos %v1884
        %s1886 = ssub.f32 %s1585, %s1875
        %v1887 = vstv %s1886
        %v1888 = vmul.f32 %v1887, 1.442695
        %v1889 = vpow.pop %v1888
        %s1890 = vtos %v1889
        %s1891 = sadd.f32 %s1880, %s1885
        %s1892 = sadd.f32 %s1891, %s1890
        %v1893 = vstv %s1892
        %v1894 = vrcp.pop %v1893
        %s1895 = vtos %v1894
        %s1896 = smul.f32 %s1880, %s1895
        %v1897 = vstv %s1896
        %v1898 = vmul.f32 %v1897, %v1171
        %v1899 = vmul.f32 %v1897, %v1176
        %s1900 = smul.f32 %s1885, %s1895
        %v1901 = vstv %s1900
        %v1902 = vmul.f32 %v1901, %v1748
        %v1903 = vmul.f32 %v1901, %v1753
        %v1904 = vadd.f32 %v1898, %v1902
        %v1905 = vadd.f32 %v1899, %v1903
        %s1906 = smul.f32 %s1890, %s1895
        %v1907 = vstv %s1906
        %v1908 = vmul.f32 %v1907, %v1460
        %v1909 = vmul.f32 %v1907, %v1465
        %v1910 = vadd.f32 %v1904, %v1908
        %v1911 = vadd.f32 %v1905, %v1909
        %1912 = vst.msk [vmem:[#allocation2] sm:$0xff] %vm908, %v1910
        %1913 = vst.msk [vmem:[#allocation2 + $0x8] sm:$0xff] %vm908, %v1911
        %v1914 = vld [vmem:[#allocation3] sm:$0xff]
        %v1915 = vld [vmem:[#allocation3 + $0x8] sm:$0xff]
        %v1916 = vadd.f32 %v1914, %v1910
        %v1917 = vadd.f32 %v1915, %v1911
        %1918 = vst.msk [vmem:[#allocation3] sm:$0xff] %vm908, %v1916
        %1919 = vst.msk [vmem:[#allocation3 + $0x8] sm:$0xff] %vm908, %v1917
        %p1920 = scmp.eq.s32.totalorder %s30, 1
        // Predicated region
        $region145: #{tpu_custom_call.1} parent=79 // pred_check
          %p1921 = pneg %p1920
        $region146: #{tpu_custom_call.1} parent=79 // pred_check_branch
          %1923 = sbr.rel (%p1921) target = $region148
        $region147: #{tpu_custom_call.1} parent=79 // pred_region
          %v1924 = vld [vmem:[#allocation3] sm:$0xff]
          %v1925 = vld [vmem:[#allocation3 + $0x8] sm:$0xff]
          %v1926 = vmul.f32 %v1924, 0.33333334
          %v1927 = vmul.f32 %v1925, 0.33333334
          %1928 = vst.msk [vmem:[#allocation23] sm:$0xff] %vm908, %v1926
          %1929 = vst.msk [vmem:[#allocation23 + $0x8] sm:$0xff] %vm908, %v1927
        $region148: #{tpu_custom_call.1} parent=79 // pred_fallthru
          _
        // Predicated region
        $region149: #{tpu_custom_call.1} parent=79 // pred_check
          %p1930 = pneg %p413
        $region150: #{tpu_custom_call.1} parent=79 // pred_check_branch
          %1932 = sbr.rel (%p1930) target = $region152
        $region151: #{tpu_custom_call.1} parent=79 // pred_region
          %s1934 = ssub.s32 256, 256
          %1935 = vsyncadd [#allocation6], %s1934
          %s1936 = sshll.u32 [#allocation23], 4
          %s1937 = int_to_ptr.vmem [resolvable:$true] %s1936
          %1942 = dma.vmem_to_hbm [thread:$0]  %s1937, 256, %s15, [#allocation6], 128, 128, 8
        $region152: #{tpu_custom_call.1} parent=79 // pred_fallthru
          _
        // Predicated region
        $region153: #{tpu_custom_call.1} parent=79 // pred_check
          %p1943 = pneg %p413
        $region154: #{tpu_custom_call.1} parent=79 // pred_check_branch
          %1945 = sbr.rel (%p1943) target = $region156
        $region155: #{tpu_custom_call.1} parent=79 // pred_region
          %1946 = dma.done [#allocation6], 256
        $region156: #{tpu_custom_call.1} parent=79 // pred_fallthru
          _
      $region80: #{tpu_custom_call.1} parent=5 // pred_fallthru
        _
      %p1947 = scmp.le.s32.totalorder 2, %s25
      // Predicated region
      $region157: #{tpu_custom_call.1} parent=5 // pred_check
        %p1948 = pneg %p1947
      $region158: #{tpu_custom_call.1} parent=5 // pred_check_branch
        %1950 = sbr.rel (%p1948) target = $region160
      $region159: #{tpu_custom_call.1} parent=5 // pred_region
        %s1951 = ssub.s32 %s25, 2
      $region160: #{tpu_custom_call.1} parent=5 // pred_fallthru
        _
    $region6: #{tpu_custom_call.1} parent=1 // loop_footer
      %s29 = sadd.s32 1, %s25
    $region7: #{tpu_custom_call.1} parent=1 // loop_footer_branch
      %24 = sbr.rel target = $region3
    $region8: #{tpu_custom_call.1} parent=1 // loop_exit
      _
    %1952 = vsyncpa [#allocation5], 1
    %s1953 = scalar_lea.sflag [#allocation5], 1
    %1954 = vsyncpa %s1953, 1
    %1955 = vsyncpa [#allocation8], 1
    %1956 = vsyncpa [#allocation11], 1
    %1957 = vsyncpa [#allocation6], 1
    %s1958 = scalar_lea.sflag [#allocation6], 1
    %1959 = vsyncpa %s1958, 1

</llo_original>
